<compile_context>
chip_gen: v6e
topology: v6e:2x2x1
jax: 0.10.0
libtpu: 0.0.40
codegen_flags: <defaults>
</compile_context>

<pallas_src>
import functools

import jax
import jax.numpy as jnp
from jax import lax
from jax.experimental import pallas as pl
from jax.experimental.pallas import tpu as pltpu


def _round_up(a: int, b: int) -> int:
    return (a + b - 1) // b * b


def _cdiv(a: int, b: int) -> int:
    return (a + b - 1) // b


@functools.lru_cache(maxsize=1)
def _vmem_capacity_bytes() -> int:
    try:
        return int(pltpu.get_tpu_info().vmem_capacity_bytes)
    except Exception:
        return 64 << 20  # conservative: v7x per-TensorCore VMEM


@functools.lru_cache(maxsize=1)
def _device_kind() -> str:
    try:
        return jax.devices()[0].device_kind.lower()
    except Exception:
        return ""


def _lane_alignment(d: int) -> int:
    """256-align the feature dim on 256x256-MXU chips (v6e/v7x) when it pays."""
    small_mxu = any(t in _device_kind() for t in ("v2", "v3", "v4", "v5"))
    return 256 if (d >= 256 and not small_mxu) else 128


def prepare_params(params, *, compute_dtype=jnp.bfloat16, lane_align=None):
    """One-time: pad feature dim, cast to compute dtype, fuse [w1 | ws]."""
    D = params["w1"].shape[0]
    if lane_align is None:
        lane_align = _lane_alignment(D)
    Dp = _round_up(D, lane_align)
    pad = Dp - D

    def pw(w):
        if pad:
            w = jnp.pad(w, ((0, pad), (0, pad)))
        return w.astype(compute_dtype)

    def pb(b):
        if pad:
            b = jnp.pad(b, ((0, 0), (0, pad)))
        return b.astype(jnp.float32)

    w1, w2, w3, ws = (pw(params[k]) for k in ("w1", "w2", "w3", "ws"))
    b1, b2, b3, bs = (pb(params[k]) for k in ("b1", "b2", "b3", "bs"))
    # Fused first layer + shortcut: x @ [w1 | ws] gives an MXU N dim >= 256
    # even for narrow D and halves MXU weight switches per batch tile.
    return {
        "w1s": jnp.concatenate([w1, ws], axis=1),
        "b1s": jnp.concatenate([b1, bs], axis=1),
        "w2": w2, "b2": b2, "w3": w3, "b3": b3,
    }


def _ff_resident_kernel(x_ref, w1s_ref, b1s_ref, w2_ref, b2_ref, w3_ref, b3_ref,
                        o_ref, *, dp, precision):
    x = x_ref[...]
    # Fused first layer + shortcut: one wide matmul, then split.
    hs = jnp.dot(x, w1s_ref[...], preferred_element_type=jnp.float32,
                 precision=precision) + b1s_ref[...]
    s = hs[:, dp:]                       # linear shortcut (no ReLU), f32
    h = jnp.maximum(hs[:, :dp], 0.0)
    h = jnp.dot(h.astype(w2_ref.dtype), w2_ref[...],
                preferred_element_type=jnp.float32, precision=precision) + b2_ref[...]
    h = jnp.maximum(h, 0.0)
    h = jnp.dot(h.astype(w3_ref.dtype), w3_ref[...],
                preferred_element_type=jnp.float32, precision=precision) + b3_ref[...]
    h = jnp.maximum(h, 0.0)
    o_ref[...] = (h + s).astype(o_ref.dtype)


def _linear_kernel(x_ref, w_ref, b_ref, o_ref, acc_ref, *, relu, precision):
    @pl.when(pl.program_id(2) == 0)
    def _():
        acc_ref[...] = jnp.zeros_like(acc_ref)

    acc_ref[...] += jnp.dot(x_ref[...], w_ref[...],
                            preferred_element_type=jnp.float32,
                            precision=precision)

    @pl.when(pl.program_id(2) == pl.num_programs(2) - 1)
    def _():
        r = acc_ref[...] + b_ref[...]
        if relu:
            r = jnp.maximum(r, 0.0)
        o_ref[...] = r.astype(o_ref.dtype)


def _linear_tiled(x, w, b, *, relu, precision, out_dtype, tm, tn, tk):
    M, K = x.shape
    N = w.shape[1]
    return pl.pallas_call(
        functools.partial(_linear_kernel, relu=relu, precision=precision),
        out_shape=jax.ShapeDtypeStruct((M, N), out_dtype),
        grid_spec=pltpu.PrefetchScalarGridSpec(
            num_scalar_prefetch=0,
            grid=(M // tm, N // tn, K // tk),
            in_specs=[
                pl.BlockSpec((tm, tk), lambda i, j, k: (i, k)),
                pl.BlockSpec((tk, tn), lambda i, j, k: (k, j)),
                pl.BlockSpec((1, tn), lambda i, j, k: (0, j)),
            ],
            out_specs=pl.BlockSpec((tm, tn), lambda i, j, k: (i, j)),
            scratch_shapes=[pltpu.VMEM((tm, tn), jnp.float32)],
        ),
        compiler_params=pltpu.CompilerParams(
            dimension_semantics=("parallel", "parallel", "arbitrary"),
        ),
    )(x, w, b)


def _choose_tm(B, tm, itemsize):
    sub = 16 if itemsize == 2 else 8   # bf16 packs 16 rows/vreg, f32 packs 8
    n_tiles = max(1, _cdiv(B, tm))
    tm_eff = _round_up(_cdiv(B, n_tiles), sub)   # minimize last-tile padding
    # v7x has 2 TensorCores; give the parallel batch axis >= 2 steps when the
    # batch is large enough so both cores get work.
    if _cdiv(B, tm_eff) == 1 and B >= 128:
        tm_eff = _round_up(_cdiv(B, 2), sub)
    return tm_eff


@functools.partial(jax.jit, static_argnames=("tm", "out_dtype", "force_tiled"))
def ff_forward(x, prepared, *, tm=256, out_dtype=None, force_tiled=False):
    """x: (B, D) float32. prepared: output of prepare_params()."""
    B, D = x.shape
    Dp = prepared["w2"].shape[0]
    compute_dtype = prepared["w2"].dtype
    out_dtype = x.dtype if out_dtype is None else jnp.dtype(out_dtype)
    precision = (lax.Precision.HIGHEST
                 if compute_dtype == jnp.float32 else None)

    tm_eff = _choose_tm(B, tm, compute_dtype.itemsize)
    Bp = _round_up(B, tm_eff)

    xp = x
    if Bp != B or Dp != D:
        xp = jnp.pad(x, ((0, Bp - B), (0, Dp - D)))
    xp = xp.astype(compute_dtype)

    # VMEM budget (per TensorCore, generation aware) vs whole-weight residency.
    c_item = compute_dtype.itemsize
    o_item = jnp.dtype(out_dtype).itemsize
    w_bytes = 4 * Dp * Dp * c_item + 4 * Dp * 4
    io_bytes = 2 * tm_eff * Dp * (c_item + o_item)
    act_bytes = 8 * tm_eff * Dp * 4
    vmem_needed = w_bytes + io_bytes + act_bytes
    budget = int(0.85 * _vmem_capacity_bytes())

    if (not force_tiled) and vmem_needed <= budget:
        # Fast path: all weights resident in VMEM (loaded once, not
        # double-buffered), single fused kernel over batch tiles.
        resident = pl.BlockSpec(memory_space=pltpu.MemorySpace.VMEM)
        out = pl.pallas_call(
            functools.partial(_ff_resident_kernel, dp=Dp, precision=precision),
            out_shape=jax.ShapeDtypeStruct((Bp, Dp), out_dtype),
            grid_spec=pltpu.PrefetchScalarGridSpec(
                num_scalar_prefetch=0,
                grid=(Bp // tm_eff,),
                in_specs=[
                    pl.BlockSpec((tm_eff, Dp), lambda i: (i, 0)),  # x (pipelined)
                    resident, resident,    # fused [w1 | ws], [b1 | bs]
                    resident, resident,    # layer 2
                    resident, resident,    # layer 3
                ],
                out_specs=pl.BlockSpec((tm_eff, Dp), lambda i: (i, 0)),
            ),
            compiler_params=pltpu.CompilerParams(
                dimension_semantics=("parallel",),
                vmem_limit_bytes=int(min(budget, max(32 << 20, 2 * vmem_needed))),
            ),
        )(xp, prepared["w1s"], prepared["b1s"], prepared["w2"], prepared["b2"],
          prepared["w3"], prepared["b3"])
    else:
        # Fallback for large D / f32 weights that do not fit VMEM: K/N-tiled
        # matmul kernels with double-buffered weight DMA overlapping the MXU.
        tn = next(c for c in (512, 256, 128) if Dp % c == 0)
        tk = tn
        hs = _linear_tiled(xp, prepared["w1s"], prepared["b1s"], relu=False,
                           precision=precision, out_dtype=jnp.float32,
                           tm=tm_eff, tn=tn, tk=tk)
        s = hs[:, Dp:]
        h = jnp.maximum(hs[:, :Dp], 0.0).astype(compute_dtype)
        h = _linear_tiled(h, prepared["w2"], prepared["b2"], relu=True,
                          precision=precision, out_dtype=compute_dtype,
                          tm=tm_eff, tn=tn, tk=tk)
        h = _linear_tiled(h, prepared["w3"], prepared["b3"], relu=True,
                          precision=precision, out_dtype=jnp.float32,
                          tm=tm_eff, tn=tn, tk=tk)
        # TODO(synk): fuse the shortcut add / slice epilogues into the tiled
        # kernels to avoid extra activation round-trips through HBM.
        out = (h + s).astype(out_dtype)

    if Bp != B or Dp != D:
        out = out[:B, :D]
    return out


def init_ff_params(key, input_dim):
    """Deterministic init mimicking PyTorch nn.Linear uniform(-1/sqrt(fan_in), +)."""
    bound = 1.0 / jnp.sqrt(jnp.float32(input_dim))
    keys = jax.random.split(key, 8)

    def lin(kw, kb):
        # Stored pre-transposed: (in_features, out_features)
        w = jax.random.uniform(kw, (input_dim, input_dim), jnp.float32, -bound, bound)
        b = jax.random.uniform(kb, (1, input_dim), jnp.float32, -bound, bound)
        return w, b

    w1, b1 = lin(keys[0], keys[1])
    w2, b2 = lin(keys[2], keys[3])
    w3, b3 = lin(keys[4], keys[5])
    ws, bs = lin(keys[6], keys[7])
    return {"w1": w1, "b1": b1, "w2": w2, "b2": b2,
            "w3": w3, "b3": b3, "ws": ws, "bs": bs}


def ff_reference(x, p):
    h = jnp.maximum(x @ p["w1"] + p["b1"], 0.0)
    h = jnp.maximum(h @ p["w2"] + p["b2"], 0.0)
    h = jnp.maximum(h @ p["w3"] + p["b3"], 0.0)
    return h + (x @ p["ws"] + p["bs"])


if __name__ == "__main__":
    B, D = 16, 32  # batch, input_dim
    key = jax.random.PRNGKey(0)
    kx, kp = jax.random.split(key)

    x = jax.random.normal(kx, (B, D), jnp.float32)
    params = init_ff_params(kp, D)
    ref = ff_reference(x, params)

    # f32 weights (Precision.HIGHEST): tight check, resident + tiled paths.
    p_f32 = prepare_params(params, compute_dtype=jnp.float32)
    out_f32 = jax.block_until_ready(ff_forward(x, p_f32))
    assert out_f32.shape == (B, D)
    assert jnp.allclose(out_f32, ref, atol=1e-5, rtol=1e-5), "f32 resident mismatch"

    out_f32_t = jax.block_until_ready(ff_forward(x, p_f32, force_tiled=True))
    assert out_f32_t.shape == (B, D)
    assert jnp.allclose(out_f32_t, ref, atol=1e-5, rtol=1e-5), "f32 tiled mismatch"

    # bf16 matmul-operand path (perf config): looser tolerance, expected change.
    p_bf16 = prepare_params(params, compute_dtype=jnp.bfloat16)
    out_bf16 = jax.block_until_ready(ff_forward(x, p_bf16))
    assert out_bf16.shape == (B, D)
    assert jnp.allclose(out_bf16, ref, atol=1e-1, rtol=5e-2), "bf16 resident mismatch"

    print("KERNEL_OK")
</pallas_src>

<mosaic_0001>
module attributes {stable_mosaic.version = 11 : i64} {
  func.func @_ff_resident_kernel(%arg0: i32, %arg1: memref<16x128xf32, #tpu.memory_space<vmem>>, %arg2: memref<128x256xf32, #tpu.memory_space<vmem>>, %arg3: memref<1x256xf32, #tpu.memory_space<vmem>>, %arg4: memref<128x128xf32, #tpu.memory_space<vmem>>, %arg5: memref<1x128xf32, #tpu.memory_space<vmem>>, %arg6: memref<128x128xf32, #tpu.memory_space<vmem>>, %arg7: memref<1x128xf32, #tpu.memory_space<vmem>>, %arg8: memref<16x128xf32, #tpu.memory_space<vmem>>) attributes {dimension_semantics = [#tpu.dimension_semantics<parallel>], iteration_bounds = array<i64: 1>, scalar_prefetch = 0 : i64, scratch_operands = 0 : i64, tpu.core_type = #tpu.core_type<tc>, window_params = [{transform_indices = @transform_0, window_bounds = array<i64: 16, 128>}, {pipeline_mode = #tpu.pipeline_mode<synchronous>, transform_indices = @transform_1, window_bounds = array<i64: 128, 256>}, {pipeline_mode = #tpu.pipeline_mode<synchronous>, transform_indices = @transform_2, window_bounds = array<i64: 1, 256>}, {pipeline_mode = #tpu.pipeline_mode<synchronous>, transform_indices = @transform_3, window_bounds = array<i64: 128, 128>}, {pipeline_mode = #tpu.pipeline_mode<synchronous>, transform_indices = @transform_4, window_bounds = array<i64: 1, 128>}, {pipeline_mode = #tpu.pipeline_mode<synchronous>, transform_indices = @transform_5, window_bounds = array<i64: 128, 128>}, {pipeline_mode = #tpu.pipeline_mode<synchronous>, transform_indices = @transform_6, window_bounds = array<i64: 1, 128>}, {transform_indices = @transform_7, window_bounds = array<i64: 16, 128>}]} {
    %c0 = arith.constant 0 : index
    %c0_0 = arith.constant 0 : index
    %0 = vector.load %arg1[%c0, %c0_0] : memref<16x128xf32, #tpu.memory_space<vmem>>, vector<16x128xf32>
    %c0_1 = arith.constant 0 : index
    %c0_2 = arith.constant 0 : index
    %1 = vector.load %arg2[%c0_1, %c0_2] : memref<128x256xf32, #tpu.memory_space<vmem>>, vector<128x256xf32>
    %cst = arith.constant dense<0.000000e+00> : vector<16x256xf32>
    %2 = tpu.matmul %0, %1, %cst {dimension_numbers = #tpu.dot_dimension_numbers<[1], [0], [0], [1], [0, 0, 1, 1], [], []>, precision = #tpu.contract_precision<fp32>} : vector<16x128xf32>, vector<128x256xf32>, vector<16x256xf32> -> vector<16x256xf32>
    %c0_3 = arith.constant 0 : index
    %c0_4 = arith.constant 0 : index
    %3 = vector.load %arg3[%c0_3, %c0_4] : memref<1x256xf32, #tpu.memory_space<vmem>>, vector<1x256xf32>
    %4 = vector.broadcast %3 : vector<1x256xf32> to vector<16x256xf32>
    %5 = arith.addf %2, %4 : vector<16x256xf32>
    %6 = vector.extract_strided_slice %5 {offsets = [0, 128], sizes = [16, 128], strides = [1, 1]} : vector<16x256xf32> to vector<16x128xf32>
    %7 = vector.extract_strided_slice %5 {offsets = [0, 0], sizes = [16, 128], strides = [1, 1]} : vector<16x256xf32> to vector<16x128xf32>
    %cst_5 = arith.constant 0.000000e+00 : f32
    %8 = vector.broadcast %cst_5 : f32 to vector<16x128xf32>
    %9 = arith.maximumf %7, %8 : vector<16x128xf32>
    %c0_6 = arith.constant 0 : index
    %c0_7 = arith.constant 0 : index
    %10 = vector.load %arg4[%c0_6, %c0_7] : memref<128x128xf32, #tpu.memory_space<vmem>>, vector<128x128xf32>
    %cst_8 = arith.constant dense<0.000000e+00> : vector<16x128xf32>
    %11 = tpu.matmul %9, %10, %cst_8 {dimension_numbers = #tpu.dot_dimension_numbers<[1], [0], [0], [1], [0, 0, 1, 1], [], []>, precision = #tpu.contract_precision<fp32>} : vector<16x128xf32>, vector<128x128xf32>, vector<16x128xf32> -> vector<16x128xf32>
    %c0_9 = arith.constant 0 : index
    %c0_10 = arith.constant 0 : index
    %12 = vector.load %arg5[%c0_9, %c0_10] : memref<1x128xf32, #tpu.memory_space<vmem>>, vector<1x128xf32>
    %13 = vector.broadcast %12 : vector<1x128xf32> to vector<16x128xf32>
    %14 = arith.addf %11, %13 : vector<16x128xf32>
    %cst_11 = arith.constant 0.000000e+00 : f32
    %15 = vector.broadcast %cst_11 : f32 to vector<16x128xf32>
    %16 = arith.maximumf %14, %15 : vector<16x128xf32>
    %c0_12 = arith.constant 0 : index
    %c0_13 = arith.constant 0 : index
    %17 = vector.load %arg6[%c0_12, %c0_13] : memref<128x128xf32, #tpu.memory_space<vmem>>, vector<128x128xf32>
    %cst_14 = arith.constant dense<0.000000e+00> : vector<16x128xf32>
    %18 = tpu.matmul %16, %17, %cst_14 {dimension_numbers = #tpu.dot_dimension_numbers<[1], [0], [0], [1], [0, 0, 1, 1], [], []>, precision = #tpu.contract_precision<fp32>} : vector<16x128xf32>, vector<128x128xf32>, vector<16x128xf32> -> vector<16x128xf32>
    %c0_15 = arith.constant 0 : index
    %c0_16 = arith.constant 0 : index
    %19 = vector.load %arg7[%c0_15, %c0_16] : memref<1x128xf32, #tpu.memory_space<vmem>>, vector<1x128xf32>
    %20 = vector.broadcast %19 : vector<1x128xf32> to vector<16x128xf32>
    %21 = arith.addf %18, %20 : vector<16x128xf32>
    %cst_17 = arith.constant 0.000000e+00 : f32
    %22 = vector.broadcast %cst_17 : f32 to vector<16x128xf32>
    %23 = arith.maximumf %21, %22 : vector<16x128xf32>
    %24 = arith.addf %23, %6 : vector<16x128xf32>
    %c0_18 = arith.constant 0 : index
    %c0_19 = arith.constant 0 : index
    %25 = vector.load %arg8[%c0_18, %c0_19] : memref<16x128xf32, #tpu.memory_space<vmem>>, vector<16x128xf32>
    tpu.vector_store %arg8[%c0_18, %c0_19], %24 {strides = array<i32>} : memref<16x128xf32, #tpu.memory_space<vmem>>, vector<16x128xf32>,
    return
  }
  func.func @transform_0(%arg0: i32) -> (i32, i32) {
    %c0_i32 = arith.constant 0 : i32
    %c0_i32_0 = arith.constant 0 : i32
    return %arg0, %c0_i32 : i32, i32
  }
  func.func @transform_1(%arg0: i32) -> (i32, i32) {
    %c0_i32 = arith.constant 0 : i32
    %c0_i32_0 = arith.constant 0 : i32
    %c0_i32_1 = arith.constant 0 : i32
    return %c0_i32, %c0_i32_0 : i32, i32
  }
  func.func @transform_2(%arg0: i32) -> (i32, i32) {
    %c0_i32 = arith.constant 0 : i32
    %c0_i32_0 = arith.constant 0 : i32
    %c0_i32_1 = arith.constant 0 : i32
    return %c0_i32, %c0_i32_0 : i32, i32
  }
  func.func @transform_3(%arg0: i32) -> (i32, i32) {
    %c0_i32 = arith.constant 0 : i32
    %c0_i32_0 = arith.constant 0 : i32
    %c0_i32_1 = arith.constant 0 : i32
    return %c0_i32, %c0_i32_0 : i32, i32
  }
  func.func @transform_4(%arg0: i32) -> (i32, i32) {
    %c0_i32 = arith.constant 0 : i32
    %c0_i32_0 = arith.constant 0 : i32
    %c0_i32_1 = arith.constant 0 : i32
    return %c0_i32, %c0_i32_0 : i32, i32
  }
  func.func @transform_5(%arg0: i32) -> (i32, i32) {
    %c0_i32 = arith.constant 0 : i32
    %c0_i32_0 = arith.constant 0 : i32
    %c0_i32_1 = arith.constant 0 : i32
    return %c0_i32, %c0_i32_0 : i32, i32
  }
  func.func @transform_6(%arg0: i32) -> (i32, i32) {
    %c0_i32 = arith.constant 0 : i32
    %c0_i32_0 = arith.constant 0 : i32
    %c0_i32_1 = arith.constant 0 : i32
    return %c0_i32, %c0_i32_0 : i32, i32
  }
  func.func @transform_7(%arg0: i32) -> (i32, i32) {
    %c0_i32 = arith.constant 0 : i32
    %c0_i32_0 = arith.constant 0 : i32
    return %arg0, %c0_i32 : i32, i32
  }
}

</mosaic_0001>

<llo_original>
// kernel: ff_forward.1
$region0: #{ff_forward.1}
  #allocation0 [shape = 'u32[]', space=smem, size = 0x4, offset = 0x4, fixed_abs, tag = 'smem constant byte address 0x4 - core index']
  #allocation1 [shape = 'u32[144,128]{1,0:T(1,128)}', space=vmem, size = 0x12000, scoped, tag = 'internal scratch']
  %s0 = inlined_call_operand.vmem [shape: f32[16,128], index: 0, kind: input, shape index: {}]
  %s1 = inlined_call_operand.hbm [shape: f32[128,256], index: 1, kind: input, shape index: {}]
  %s2 = inlined_call_operand.vmem [shape: f32[1,256], index: 2, kind: input, shape index: {}]
  %s3 = inlined_call_operand.hbm [shape: f32[128,128], index: 3, kind: input, shape index: {}]
  %s4 = inlined_call_operand.vmem [shape: f32[1,128], index: 4, kind: input, shape index: {}]
  %s5 = inlined_call_operand.hbm [shape: f32[128,128], index: 5, kind: input, shape index: {}]
  %s6 = inlined_call_operand.vmem [shape: f32[1,128], index: 6, kind: input, shape index: {}]
  %s7 = inlined_call_operand.hbm [shape: f32[16,128], index: 7, kind: output, shape index: {}]
  %s8 = sld [smem:[#allocation0]]
  $region50: #{ff_forward.1} parent=0
    _
  %s10 = ssub.s32 1, %s8
  %s11 = scalar_select 0, %s10, %s8
  $region1: #{ff_forward.1} parent=0
    #allocation2 [shape = 'u8[131072]{0}', space=vmem, size = 0x20000, scoped, tag = 'input window, operand 1, single buffered']
    #allocation3 [shape = 's32[1]{0}', space=sflag, size = 0x4, scoped, tag = 'scoped memory for ff_forward.1']
    #allocation4 [shape = 's32[1]{0}', space=sflag, size = 0x4, scoped, tag = 'scoped memory for ff_forward.1']
    #allocation5 [shape = 'u8[65536]{0}', space=vmem, size = 0x10000, scoped, tag = 'input window, operand 3, single buffered']
    #allocation6 [shape = 's32[1]{0}', space=sflag, size = 0x4, scoped, tag = 'scoped memory for ff_forward.1']
    #allocation7 [shape = 'u8[65536]{0}', space=vmem, size = 0x10000, scoped, tag = 'input window, operand 5, single buffered']
    #allocation8 [shape = 'u8[8192]{0}', space=vmem, size = 0x2000, scoped, tag = 'output window, operand 0, single buffered']
    %12 = vsyncpa [#allocation3], 0
    %13 = vsyncpa [#allocation6], 0
    %14 = vsyncpa [#allocation4], 0
    // Predicated region
    $region2: #{ff_forward.1} parent=1 // pred_check
      _
    $region3: #{ff_forward.1} parent=1 // pred_check_branch
      %16 = sbr.rel (0) target = $region5
    $region4: #{ff_forward.1} parent=1 // pred_region
      _
    $region5: #{ff_forward.1} parent=1 // pred_fallthru
      _
    // Predicated region
    $region6: #{ff_forward.1} parent=1 // pred_check
      _
    $region7: #{ff_forward.1} parent=1 // pred_check_branch
      %18 = sbr.rel (0) target = $region9
    $region8: #{ff_forward.1} parent=1 // pred_region
      %s20 = ssub.s32 4096, 4096
      %21 = vsyncadd [#allocation3], %s20
      %s22 = sshll.u32 [#allocation2], 4
      %s23 = int_to_ptr.vmem [resolvable:$true] %s22
      %28 = dma.hbm_to_vmem [thread:$0]  %s1, 4096, %s23, [#allocation3], 256, 256, 16
    $region9: #{ff_forward.1} parent=1 // pred_fallthru
      _
    // Predicated region
    $region10: #{ff_forward.1} parent=1 // pred_check
      _
    $region11: #{ff_forward.1} parent=1 // pred_check_branch
      %30 = sbr.rel (0) target = $region13
    $region12: #{ff_forward.1} parent=1 // pred_region
      _
    $region13: #{ff_forward.1} parent=1 // pred_fallthru
      _
    // Predicated region
    $region14: #{ff_forward.1} parent=1 // pred_check
      _
    $region15: #{ff_forward.1} parent=1 // pred_check_branch
      %32 = sbr.rel (0) target = $region17
    $region16: #{ff_forward.1} parent=1 // pred_region
      %s34 = ssub.s32 2048, 2048
      %35 = vsyncadd [#allocation6], %s34
      %s36 = sshll.u32 [#allocation5], 4
      %s37 = int_to_ptr.vmem [resolvable:$true] %s36
      %42 = dma.hbm_to_vmem [thread:$0]  %s3, 2048, %s37, [#allocation6], 128, 128, 8
    $region17: #{ff_forward.1} parent=1 // pred_fallthru
      _
    // Predicated region
    $region18: #{ff_forward.1} parent=1 // pred_check
      _
    $region19: #{ff_forward.1} parent=1 // pred_check_branch
      %44 = sbr.rel (0) target = $region21
    $region20: #{ff_forward.1} parent=1 // pred_region
      _
    $region21: #{ff_forward.1} parent=1 // pred_fallthru
      _
    // Predicated region
    $region22: #{ff_forward.1} parent=1 // pred_check
      _
    $region23: #{ff_forward.1} parent=1 // pred_check_branch
      %46 = sbr.rel (0) target = $region25
    $region24: #{ff_forward.1} parent=1 // pred_region
      %s48 = ssub.s32 2048, 2048
      %49 = vsyncadd [#allocation6], %s48
      %s50 = sshll.u32 [#allocation7], 4
      %s51 = int_to_ptr.vmem [resolvable:$true] %s50
      %56 = dma.hbm_to_vmem [thread:$0]  %s5, 2048, %s51, [#allocation6], 128, 128, 8
    $region25: #{ff_forward.1} parent=1 // pred_fallthru
      _
    // Predicated region
    $region26: #{ff_forward.1} parent=1 // pred_check
      _
    $region27: #{ff_forward.1} parent=1 // pred_check_branch
      %58 = sbr.rel (0) target = $region29
    $region28: #{ff_forward.1} parent=1 // pred_region
      _
    $region29: #{ff_forward.1} parent=1 // pred_fallthru
      _
    // Predicated region
    $region30: #{ff_forward.1} parent=1 // pred_check
      _
    $region31: #{ff_forward.1} parent=1 // pred_check_branch
      %60 = sbr.rel (0) target = $region33
    $region32: #{ff_forward.1} parent=1 // pred_region
      %61 = dma.done [#allocation3], 4096
    $region33: #{ff_forward.1} parent=1 // pred_fallthru
      _
    // Predicated region
    $region34: #{ff_forward.1} parent=1 // pred_check
      _
    $region35: #{ff_forward.1} parent=1 // pred_check_branch
      %63 = sbr.rel (0) target = $region37
    $region36: #{ff_forward.1} parent=1 // pred_region
      %64 = dma.done [#allocation6], 2048
    $region37: #{ff_forward.1} parent=1 // pred_fallthru
      _
    // Predicated region
    $region38: #{ff_forward.1} parent=1 // pred_check
      _
    $region39: #{ff_forward.1} parent=1 // pred_check_branch
      %66 = sbr.rel (0) target = $region41
    $region40: #{ff_forward.1} parent=1 // pred_region
      %67 = dma.done [#allocation6], 2048
    $region41: #{ff_forward.1} parent=1 // pred_fallthru
      _
    %v68 = vld [vmem:[%s0] sm:$0xff]
    %v69 = vld [vmem:[%s0 + $0x8] sm:$0xff]
    %v70 = vld [vmem:[#allocation2] sm:$0xff]
    %v71 = vld [vmem:[#allocation2 + $0x8] sm:$0xff]
    %v72 = vld [vmem:[#allocation2 + $0x10] sm:$0xff]
    %v73 = vld [vmem:[#allocation2 + $0x18] sm:$0xff]
    %v74 = vld [vmem:[#allocation2 + $0x20] sm:$0xff]
    %v75 = vld [vmem:[#allocation2 + $0x28] sm:$0xff]
    %v76 = vld [vmem:[#allocation2 + $0x30] sm:$0xff]
    %v77 = vld [vmem:[#allocation2 + $0x38] sm:$0xff]
    %v78 = vld [vmem:[#allocation2 + $0x40] sm:$0xff]
    %v79 = vld [vmem:[#allocation2 + $0x48] sm:$0xff]
    %v80 = vld [vmem:[#allocation2 + $0x50] sm:$0xff]
    %v81 = vld [vmem:[#allocation2 + $0x58] sm:$0xff]
    %v82 = vld [vmem:[#allocation2 + $0x60] sm:$0xff]
    %v83 = vld [vmem:[#allocation2 + $0x68] sm:$0xff]
    %v84 = vld [vmem:[#allocation2 + $0x70] sm:$0xff]
    %v85 = vld [vmem:[#allocation2 + $0x78] sm:$0xff]
    %v86 = vld [vmem:[#allocation2 + $0x80] sm:$0xff]
    %v87 = vld [vmem:[#allocation2 + $0x88] sm:$0xff]
    %v88 = vld [vmem:[#allocation2 + $0x90] sm:$0xff]
    %v89 = vld [vmem:[#allocation2 + $0x98] sm:$0xff]
    %v90 = vld [vmem:[#allocation2 + $0xa0] sm:$0xff]
    %v91 = vld [vmem:[#allocation2 + $0xa8] sm:$0xff]
    %v92 = vld [vmem:[#allocation2 + $0xb0] sm:$0xff]
    %v93 = vld [vmem:[#allocation2 + $0xb8] sm:$0xff]
    %v94 = vld [vmem:[#allocation2 + $0xc0] sm:$0xff]
    %v95 = vld [vmem:[#allocation2 + $0xc8] sm:$0xff]
    %v96 = vld [vmem:[#allocation2 + $0xd0] sm:$0xff]
    %v97 = vld [vmem:[#allocation2 + $0xd8] sm:$0xff]
    %v98 = vld [vmem:[#allocation2 + $0xe0] sm:$0xff]
    %v99 = vld [vmem:[#allocation2 + $0xe8] sm:$0xff]
    %v100 = vld [vmem:[#allocation2 + $0xf0] sm:$0xff]
    %v101 = vld [vmem:[#allocation2 + $0xf8] sm:$0xff]
    %v102 = vld [vmem:[%s2] sm:$0x3]
    %v104 = vlaneseq
    %v105 = vshrl.u32 %v104, 7
    %v106 = vsub.s32 0, %v105
    %v107 = vrot.slane %v102, %v106
    %v108 = vlaneseq
    %v109 = vshrl.u32 %v108, 7
    %v110 = vsub.s32 1, %v109
    %v111 = vrot.slane %v102, %v110
    %v114 = vand.u32 %v101, 4294901760
    %115 = vmatprep.subr.mxu0 %v114
    %v116 = vand.u32 %v100, 4294901760
    %117 = vmatpush1.msra.mxu0 %v116
    %v118 = vand.u32 %v99, 4294901760
    %119 = vmatprep.subr.mxu0 %v118
    %v120 = vand.u32 %v98, 4294901760
    %121 = vmatpush1.msra.mxu0 %v120
    %v122 = vand.u32 %v97, 4294901760
    %123 = vmatprep.subr.mxu0 %v122
    %v124 = vand.u32 %v96, 4294901760
    %125 = vmatpush1.msra.mxu0 %v124
    %v126 = vand.u32 %v95, 4294901760
    %127 = vmatprep.subr.mxu0 %v126
    %v128 = vand.u32 %v94, 4294901760
    %129 = vmatpush1.msra.mxu0 %v128
    %v130 = vand.u32 %v93, 4294901760
    %131 = vmatprep.subr.mxu0 %v130
    %v132 = vand.u32 %v92, 4294901760
    %133 = vmatpush1.msra.mxu0 %v132
    %v134 = vand.u32 %v91, 4294901760
    %135 = vmatprep.subr.mxu0 %v134
    %v136 = vand.u32 %v90, 4294901760
    %137 = vmatpush1.msra.mxu0 %v136
    %v138 = vand.u32 %v89, 4294901760
    %139 = vmatprep.subr.mxu0 %v138
    %v140 = vand.u32 %v88, 4294901760
    %141 = vmatpush1.msra.mxu0 %v140
    %v142 = vand.u32 %v87, 4294901760
    %143 = vmatprep.subr.mxu0 %v142
    %v144 = vand.u32 %v86, 4294901760
    %145 = vmatpush1.msra.mxu0 %v144
    %v146 = vand.u32 %v85, 4294901760
    %147 = vmatprep.subr.mxu0 %v146
    %v148 = vand.u32 %v84, 4294901760
    %149 = vmatpush1.msra.mxu0 %v148
    %v150 = vand.u32 %v83, 4294901760
    %151 = vmatprep.subr.mxu0 %v150
    %v152 = vand.u32 %v82, 4294901760
    %153 = vmatpush1.msra.mxu0 %v152
    %v154 = vand.u32 %v81, 4294901760
    %155 = vmatprep.subr.mxu0 %v154
    %v156 = vand.u32 %v80, 4294901760
    %157 = vmatpush1.msra.mxu0 %v156
    %v158 = vand.u32 %v79, 4294901760
    %159 = vmatprep.subr.mxu0 %v158
    %v160 = vand.u32 %v78, 4294901760
    %161 = vmatpush1.msra.mxu0 %v160
    %v162 = vand.u32 %v77, 4294901760
    %163 = vmatprep.subr.mxu0 %v162
    %v164 = vand.u32 %v76, 4294901760
    %165 = vmatpush1.msra.mxu0 %v164
    %v166 = vand.u32 %v75, 4294901760
    %167 = vmatprep.subr.mxu0 %v166
    %v168 = vand.u32 %v74, 4294901760
    %169 = vmatpush1.msra.mxu0 %v168
    %v170 = vand.u32 %v73, 4294901760
    %171 = vmatprep.subr.mxu0 %v170
    %v172 = vand.u32 %v72, 4294901760
    %173 = vmatpush1.msra.mxu0 %v172
    %v174 = vand.u32 %v71, 4294901760
    %175 = vmatprep.subr.mxu0 %v174
    %v176 = vand.u32 %v70, 4294901760
    %177 = vmatpush1.msra.mxu0 %v176
    %178 = vmatprep.subr.mxu0 0.0
    %179 = vmatpush2.msra.mxu0 0.0
    %180 = vmatprep.subr.mxu0 0.0
    %181 = vmatpush2.msra.mxu0 0.0
    %182 = vmatprep.subr.mxu0 0.0
    %183 = vmatpush2.msra.mxu0 0.0
    %184 = vmatprep.subr.mxu0 0.0
    %185 = vmatpush2.msra.mxu0 0.0
    %186 = vmatprep.subr.mxu0 0.0
    %187 = vmatpush2.msra.mxu0 0.0
    %188 = vmatprep.subr.mxu0 0.0
    %189 = vmatpush2.msra.mxu0 0.0
    %190 = vmatprep.subr.mxu0 0.0
    %191 = vmatpush2.msra.mxu0 0.0
    %192 = vmatprep.subr.mxu0 0.0
    %193 = vmatpush2.msra.mxu0 0.0
    %194 = vmatprep.subr.mxu0 0.0
    %195 = vmatpush2.msra.mxu0 0.0
    %196 = vmatprep.subr.mxu0 0.0
    %197 = vmatpush2.msra.mxu0 0.0
    %198 = vmatprep.subr.mxu0 0.0
    %199 = vmatpush2.msra.mxu0 0.0
    %200 = vmatprep.subr.mxu0 0.0
    %201 = vmatpush2.msra.mxu0 0.0
    %202 = vmatprep.subr.mxu0 0.0
    %203 = vmatpush2.msra.mxu0 0.0
    %204 = vmatprep.subr.mxu0 0.0
    %205 = vmatpush2.msra.mxu0 0.0
    %206 = vmatprep.subr.mxu0 0.0
    %207 = vmatpush2.msra.mxu0 0.0
    %208 = vmatprep.subr.mxu0 0.0
    %209 = vmatpush2.msra.mxu0 0.0
    %210 = vmatprep.mubr.f32.mxu0 0.0
    %v211 = vand.u32 %v68, 4294901760
    %v212 = vsub.f32 %v68, %v211
    %v213 = vand.u32 %v212, 4294901760
    %v214 = vsub.f32 %v212, %v213
    %v215 = vand.u32 %v214, 4294901760
    %216 = vmatmul.mubr.f32.gmra.mxu0 %v215
    %v217 = vpop.f32.mrf.mxu0
    %v218 = vadd.f32 %v107, %v217
    %v219 = vpop.f32.mrf.mxu0
    %v220 = vadd.f32 %v111, %v219
    %221 = vmatprep.mubr.f32.mxu0 0.0
    %v222 = vand.u32 %v69, 4294901760
    %v223 = vsub.f32 %v69, %v222
    %v224 = vand.u32 %v223, 4294901760
    %v225 = vsub.f32 %v223, %v224
    %v226 = vand.u32 %v225, 4294901760
    %227 = vmatmul.mubr.f32.gmra.mxu0 %v226
    %v228 = vpop.f32.mrf.mxu0
    %v229 = vadd.f32 %v107, %v228
    %v230 = vpop.f32.mrf.mxu0
    %v231 = vadd.f32 %v111, %v230
    %232 = vdwg.mxu0
    %v233 = vand.u32 %v101, 4294901760
    %v234 = vsub.f32 %v101, %v233
    %v235 = vand.u32 %v234, 4294901760
    %v236 = vsub.f32 %v234, %v235
    %v237 = vand.u32 %v236, 4294901760
    %238 = vmatprep.subr.mxu0 %v237
    %v239 = vand.u32 %v100, 4294901760
    %v240 = vsub.f32 %v100, %v239
    %v241 = vand.u32 %v240, 4294901760
    %v242 = vsub.f32 %v240, %v241
    %v243 = vand.u32 %v242, 4294901760
    %244 = vmatpush1.msra.mxu0 %v243
    %v245 = vand.u32 %v99, 4294901760
    %v246 = vsub.f32 %v99, %v245
    %v247 = vand.u32 %v246, 4294901760
    %v248 = vsub.f32 %v246, %v247
    %v249 = vand.u32 %v248, 4294901760
    %250 = vmatprep.subr.mxu0 %v249
    %v251 = vand.u32 %v98, 4294901760
    %v252 = vsub.f32 %v98, %v251
    %v253 = vand.u32 %v252, 4294901760
    %v254 = vsub.f32 %v252, %v253
    %v255 = vand.u32 %v254, 4294901760
    %256 = vmatpush1.msra.mxu0 %v255
    %v257 = vand.u32 %v97, 4294901760
    %v258 = vsub.f32 %v97, %v257
    %v259 = vand.u32 %v258, 4294901760
    %v260 = vsub.f32 %v258, %v259
    %v261 = vand.u32 %v260, 4294901760
    %262 = vmatprep.subr.mxu0 %v261
    %v263 = vand.u32 %v96, 4294901760
    %v264 = vsub.f32 %v96, %v263
    %v265 = vand.u32 %v264, 4294901760
    %v266 = vsub.f32 %v264, %v265
    %v267 = vand.u32 %v266, 4294901760
    %268 = vmatpush1.msra.mxu0 %v267
    %v269 = vand.u32 %v95, 4294901760
    %v270 = vsub.f32 %v95, %v269
    %v271 = vand.u32 %v270, 4294901760
    %v272 = vsub.f32 %v270, %v271
    %v273 = vand.u32 %v272, 4294901760
    %274 = vmatprep.subr.mxu0 %v273
    %v275 = vand.u32 %v94, 4294901760
    %v276 = vsub.f32 %v94, %v275
    %v277 = vand.u32 %v276, 4294901760
    %v278 = vsub.f32 %v276, %v277
    %v279 = vand.u32 %v278, 4294901760
    %280 = vmatpush1.msra.mxu0 %v279
    %v281 = vand.u32 %v93, 4294901760
    %v282 = vsub.f32 %v93, %v281
    %v283 = vand.u32 %v282, 4294901760
    %v284 = vsub.f32 %v282, %v283
    %v285 = vand.u32 %v284, 4294901760
    %286 = vmatprep.subr.mxu0 %v285
    %v287 = vand.u32 %v92, 4294901760
    %v288 = vsub.f32 %v92, %v287
    %v289 = vand.u32 %v288, 4294901760
    %v290 = vsub.f32 %v288, %v289
    %v291 = vand.u32 %v290, 4294901760
    %292 = vmatpush1.msra.mxu0 %v291
    %v293 = vand.u32 %v91, 4294901760
    %v294 = vsub.f32 %v91, %v293
    %v295 = vand.u32 %v294, 4294901760
    %v296 = vsub.f32 %v294, %v295
    %v297 = vand.u32 %v296, 4294901760
    %298 = vmatprep.subr.mxu0 %v297
    %v299 = vand.u32 %v90, 4294901760
    %v300 = vsub.f32 %v90, %v299
    %v301 = vand.u32 %v300, 4294901760
    %v302 = vsub.f32 %v300, %v301
    %v303 = vand.u32 %v302, 4294901760
    %304 = vmatpush1.msra.mxu0 %v303
    %v305 = vand.u32 %v89, 4294901760
    %v306 = vsub.f32 %v89, %v305
    %v307 = vand.u32 %v306, 4294901760
    %v308 = vsub.f32 %v306, %v307
    %v309 = vand.u32 %v308, 4294901760
    %310 = vmatprep.subr.mxu0 %v309
    %v311 = vand.u32 %v88, 4294901760
    %v312 = vsub.f32 %v88, %v311
    %v313 = vand.u32 %v312, 4294901760
    %v314 = vsub.f32 %v312, %v313
    %v315 = vand.u32 %v314, 4294901760
    %316 = vmatpush1.msra.mxu0 %v315
    %v317 = vand.u32 %v87, 4294901760
    %v318 = vsub.f32 %v87, %v317
    %v319 = vand.u32 %v318, 4294901760
    %v320 = vsub.f32 %v318, %v319
    %v321 = vand.u32 %v320, 4294901760
    %322 = vmatprep.subr.mxu0 %v321
    %v323 = vand.u32 %v86, 4294901760
    %v324 = vsub.f32 %v86, %v323
    %v325 = vand.u32 %v324, 4294901760
    %v326 = vsub.f32 %v324, %v325
    %v327 = vand.u32 %v326, 4294901760
    %328 = vmatpush1.msra.mxu0 %v327
    %v329 = vand.u32 %v85, 4294901760
    %v330 = vsub.f32 %v85, %v329
    %v331 = vand.u32 %v330, 4294901760
    %v332 = vsub.f32 %v330, %v331
    %v333 = vand.u32 %v332, 4294901760
    %334 = vmatprep.subr.mxu0 %v333
    %v335 = vand.u32 %v84, 4294901760
    %v336 = vsub.f32 %v84, %v335
    %v337 = vand.u32 %v336, 4294901760
    %v338 = vsub.f32 %v336, %v337
    %v339 = vand.u32 %v338, 4294901760
    %340 = vmatpush1.msra.mxu0 %v339
    %v341 = vand.u32 %v83, 4294901760
    %v342 = vsub.f32 %v83, %v341
    %v343 = vand.u32 %v342, 4294901760
    %v344 = vsub.f32 %v342, %v343
    %v345 = vand.u32 %v344, 4294901760
    %346 = vmatprep.subr.mxu0 %v345
    %v347 = vand.u32 %v82, 4294901760
    %v348 = vsub.f32 %v82, %v347
    %v349 = vand.u32 %v348, 4294901760
    %v350 = vsub.f32 %v348, %v349
    %v351 = vand.u32 %v350, 4294901760
    %352 = vmatpush1.msra.mxu0 %v351
    %v353 = vand.u32 %v81, 4294901760
    %v354 = vsub.f32 %v81, %v353
    %v355 = vand.u32 %v354, 4294901760
    %v356 = vsub.f32 %v354, %v355
    %v357 = vand.u32 %v356, 4294901760
    %358 = vmatprep.subr.mxu0 %v357
    %v359 = vand.u32 %v80, 4294901760
    %v360 = vsub.f32 %v80, %v359
    %v361 = vand.u32 %v360, 4294901760
    %v362 = vsub.f32 %v360, %v361
    %v363 = vand.u32 %v362, 4294901760
    %364 = vmatpush1.msra.mxu0 %v363
    %v365 = vand.u32 %v79, 4294901760
    %v366 = vsub.f32 %v79, %v365
    %v367 = vand.u32 %v366, 4294901760
    %v368 = vsub.f32 %v366, %v367
    %v369 = vand.u32 %v368, 4294901760
    %370 = vmatprep.subr.mxu0 %v369
    %v371 = vand.u32 %v78, 4294901760
    %v372 = vsub.f32 %v78, %v371
    %v373 = vand.u32 %v372, 4294901760
    %v374 = vsub.f32 %v372, %v373
    %v375 = vand.u32 %v374, 4294901760
    %376 = vmatpush1.msra.mxu0 %v375
    %v377 = vand.u32 %v77, 4294901760
    %v378 = vsub.f32 %v77, %v377
    %v379 = vand.u32 %v378, 4294901760
    %v380 = vsub.f32 %v378, %v379
    %v381 = vand.u32 %v380, 4294901760
    %382 = vmatprep.subr.mxu0 %v381
    %v383 = vand.u32 %v76, 4294901760
    %v384 = vsub.f32 %v76, %v383
    %v385 = vand.u32 %v384, 4294901760
    %v386 = vsub.f32 %v384, %v385
    %v387 = vand.u32 %v386, 4294901760
    %388 = vmatpush1.msra.mxu0 %v387
    %v389 = vand.u32 %v75, 4294901760
    %v390 = vsub.f32 %v75, %v389
    %v391 = vand.u32 %v390, 4294901760
    %v392 = vsub.f32 %v390, %v391
    %v393 = vand.u32 %v392, 4294901760
    %394 = vmatprep.subr.mxu0 %v393
    %v395 = vand.u32 %v74, 4294901760
    %v396 = vsub.f32 %v74, %v395
    %v397 = vand.u32 %v396, 4294901760
    %v398 = vsub.f32 %v396, %v397
    %v399 = vand.u32 %v398, 4294901760
    %400 = vmatpush1.msra.mxu0 %v399
    %v401 = vand.u32 %v73, 4294901760
    %v402 = vsub.f32 %v73, %v401
    %v403 = vand.u32 %v402, 4294901760
    %v404 = vsub.f32 %v402, %v403
    %v405 = vand.u32 %v404, 4294901760
    %406 = vmatprep.subr.mxu0 %v405
    %v407 = vand.u32 %v72, 4294901760
    %v408 = vsub.f32 %v72, %v407
    %v409 = vand.u32 %v408, 4294901760
    %v410 = vsub.f32 %v408, %v409
    %v411 = vand.u32 %v410, 4294901760
    %412 = vmatpush1.msra.mxu0 %v411
    %v413 = vand.u32 %v71, 4294901760
    %v414 = vsub.f32 %v71, %v413
    %v415 = vand.u32 %v414, 4294901760
    %v416 = vsub.f32 %v414, %v415
    %v417 = vand.u32 %v416, 4294901760
    %418 = vmatprep.subr.mxu0 %v417
    %v419 = vand.u32 %v70, 4294901760
    %v420 = vsub.f32 %v70, %v419
    %v421 = vand.u32 %v420, 4294901760
    %v422 = vsub.f32 %v420, %v421
    %v423 = vand.u32 %v422, 4294901760
    %424 = vmatpush1.msra.mxu0 %v423
    %425 = vmatprep.subr.mxu0 0.0
    %426 = vmatpush2.msra.mxu0 0.0
    %427 = vmatprep.subr.mxu0 0.0
    %428 = vmatpush2.msra.mxu0 0.0
    %429 = vmatprep.subr.mxu0 0.0
    %430 = vmatpush2.msra.mxu0 0.0
    %431 = vmatprep.subr.mxu0 0.0
    %432 = vmatpush2.msra.mxu0 0.0
    %433 = vmatprep.subr.mxu0 0.0
    %434 = vmatpush2.msra.mxu0 0.0
    %435 = vmatprep.subr.mxu0 0.0
    %436 = vmatpush2.msra.mxu0 0.0
    %437 = vmatprep.subr.mxu0 0.0
    %438 = vmatpush2.msra.mxu0 0.0
    %439 = vmatprep.subr.mxu0 0.0
    %440 = vmatpush2.msra.mxu0 0.0
    %441 = vmatprep.subr.mxu0 0.0
    %442 = vmatpush2.msra.mxu0 0.0
    %443 = vmatprep.subr.mxu0 0.0
    %444 = vmatpush2.msra.mxu0 0.0
    %445 = vmatprep.subr.mxu0 0.0
    %446 = vmatpush2.msra.mxu0 0.0
    %447 = vmatprep.subr.mxu0 0.0
    %448 = vmatpush2.msra.mxu0 0.0
    %449 = vmatprep.subr.mxu0 0.0
    %450 = vmatpush2.msra.mxu0 0.0
    %451 = vmatprep.subr.mxu0 0.0
    %452 = vmatpush2.msra.mxu0 0.0
    %453 = vmatprep.subr.mxu0 0.0
    %454 = vmatpush2.msra.mxu0 0.0
    %455 = vmatprep.subr.mxu0 0.0
    %456 = vmatpush2.msra.mxu0 0.0
    %457 = vmatprep.mubr.f32.mxu0 0.0
    %v458 = vand.u32 %v68, 4294901760
    %459 = vmatmul.mubr.f32.gmra.mxu0 %v458
    %v460 = vpop.f32.mrf.mxu0
    %v461 = vadd.f32 %v218, %v460
    %v462 = vpop.f32.mrf.mxu0
    %v463 = vadd.f32 %v220, %v462
    %464 = vmatprep.mubr.f32.mxu0 0.0
    %v465 = vand.u32 %v69, 4294901760
    %466 = vmatmul.mubr.f32.gmra.mxu0 %v465
    %v467 = vpop.f32.mrf.mxu0
    %v468 = vadd.f32 %v229, %v467
    %v469 = vpop.f32.mrf.mxu0
    %v470 = vadd.f32 %v231, %v469
    %471 = vdwg.mxu0
    %v472 = vand.u32 %v101, 4294901760
    %v473 = vsub.f32 %v101, %v472
    %474 = vmatprep.subr.mxu0 %v473
    %v475 = vand.u32 %v100, 4294901760
    %v476 = vsub.f32 %v100, %v475
    %477 = vmatpush1.msra.mxu0 %v476
    %v478 = vand.u32 %v99, 4294901760
    %v479 = vsub.f32 %v99, %v478
    %480 = vmatprep.subr.mxu0 %v479
    %v481 = vand.u32 %v98, 4294901760
    %v482 = vsub.f32 %v98, %v481
    %483 = vmatpush1.msra.mxu0 %v482
    %v484 = vand.u32 %v97, 4294901760
    %v485 = vsub.f32 %v97, %v484
    %486 = vmatprep.subr.mxu0 %v485
    %v487 = vand.u32 %v96, 4294901760
    %v488 = vsub.f32 %v96, %v487
    %489 = vmatpush1.msra.mxu0 %v488
    %v490 = vand.u32 %v95, 4294901760
    %v491 = vsub.f32 %v95, %v490
    %492 = vmatprep.subr.mxu0 %v491
    %v493 = vand.u32 %v94, 4294901760
    %v494 = vsub.f32 %v94, %v493
    %495 = vmatpush1.msra.mxu0 %v494
    %v496 = vand.u32 %v93, 4294901760
    %v497 = vsub.f32 %v93, %v496
    %498 = vmatprep.subr.mxu0 %v497
    %v499 = vand.u32 %v92, 4294901760
    %v500 = vsub.f32 %v92, %v499
    %501 = vmatpush1.msra.mxu0 %v500
    %v502 = vand.u32 %v91, 4294901760
    %v503 = vsub.f32 %v91, %v502
    %504 = vmatprep.subr.mxu0 %v503
    %v505 = vand.u32 %v90, 4294901760
    %v506 = vsub.f32 %v90, %v505
    %507 = vmatpush1.msra.mxu0 %v506
    %v508 = vand.u32 %v89, 4294901760
    %v509 = vsub.f32 %v89, %v508
    %510 = vmatprep.subr.mxu0 %v509
    %v511 = vand.u32 %v88, 4294901760
    %v512 = vsub.f32 %v88, %v511
    %513 = vmatpush1.msra.mxu0 %v512
    %v514 = vand.u32 %v87, 4294901760
    %v515 = vsub.f32 %v87, %v514
    %516 = vmatprep.subr.mxu0 %v515
    %v517 = vand.u32 %v86, 4294901760
    %v518 = vsub.f32 %v86, %v517
    %519 = vmatpush1.msra.mxu0 %v518
    %v520 = vand.u32 %v85, 4294901760
    %v521 = vsub.f32 %v85, %v520
    %522 = vmatprep.subr.mxu0 %v521
    %v523 = vand.u32 %v84, 4294901760
    %v524 = vsub.f32 %v84, %v523
    %525 = vmatpush1.msra.mxu0 %v524
    %v526 = vand.u32 %v83, 4294901760
    %v527 = vsub.f32 %v83, %v526
    %528 = vmatprep.subr.mxu0 %v527
    %v529 = vand.u32 %v82, 4294901760
    %v530 = vsub.f32 %v82, %v529
    %531 = vmatpush1.msra.mxu0 %v530
    %v532 = vand.u32 %v81, 4294901760
    %v533 = vsub.f32 %v81, %v532
    %534 = vmatprep.subr.mxu0 %v533
    %v535 = vand.u32 %v80, 4294901760
    %v536 = vsub.f32 %v80, %v535
    %537 = vmatpush1.msra.mxu0 %v536
    %v538 = vand.u32 %v79, 4294901760
    %v539 = vsub.f32 %v79, %v538
    %540 = vmatprep.subr.mxu0 %v539
    %v541 = vand.u32 %v78, 4294901760
    %v542 = vsub.f32 %v78, %v541
    %543 = vmatpush1.msra.mxu0 %v542
    %v544 = vand.u32 %v77, 4294901760
    %v545 = vsub.f32 %v77, %v544
    %546 = vmatprep.subr.mxu0 %v545
    %v547 = vand.u32 %v76, 4294901760
    %v548 = vsub.f32 %v76, %v547
    %549 = vmatpush1.msra.mxu0 %v548
    %v550 = vand.u32 %v75, 4294901760
    %v551 = vsub.f32 %v75, %v550
    %552 = vmatprep.subr.mxu0 %v551
    %v553 = vand.u32 %v74, 4294901760
    %v554 = vsub.f32 %v74, %v553
    %555 = vmatpush1.msra.mxu0 %v554
    %v556 = vand.u32 %v73, 4294901760
    %v557 = vsub.f32 %v73, %v556
    %558 = vmatprep.subr.mxu0 %v557
    %v559 = vand.u32 %v72, 4294901760
    %v560 = vsub.f32 %v72, %v559
    %561 = vmatpush1.msra.mxu0 %v560
    %v562 = vand.u32 %v71, 4294901760
    %v563 = vsub.f32 %v71, %v562
    %564 = vmatprep.subr.mxu0 %v563
    %v565 = vand.u32 %v70, 4294901760
    %v566 = vsub.f32 %v70, %v565
    %567 = vmatpush1.msra.mxu0 %v566
    %568 = vmatprep.subr.mxu0 0.0
    %569 = vmatpush2.msra.mxu0 0.0
    %570 = vmatprep.subr.mxu0 0.0
    %571 = vmatpush2.msra.mxu0 0.0
    %572 = vmatprep.subr.mxu0 0.0
    %573 = vmatpush2.msra.mxu0 0.0
    %574 = vmatprep.subr.mxu0 0.0
    %575 = vmatpush2.msra.mxu0 0.0
    %576 = vmatprep.subr.mxu0 0.0
    %577 = vmatpush2.msra.mxu0 0.0
    %578 = vmatprep.subr.mxu0 0.0
    %579 = vmatpush2.msra.mxu0 0.0
    %580 = vmatprep.subr.mxu0 0.0
    %581 = vmatpush2.msra.mxu0 0.0
    %582 = vmatprep.subr.mxu0 0.0
    %583 = vmatpush2.msra.mxu0 0.0
    %584 = vmatprep.subr.mxu0 0.0
    %585 = vmatpush2.msra.mxu0 0.0
    %586 = vmatprep.subr.mxu0 0.0
    %587 = vmatpush2.msra.mxu0 0.0
    %588 = vmatprep.subr.mxu0 0.0
    %589 = vmatpush2.msra.mxu0 0.0
    %590 = vmatprep.subr.mxu0 0.0
    %591 = vmatpush2.msra.mxu0 0.0
    %592 = vmatprep.subr.mxu0 0.0
    %593 = vmatpush2.msra.mxu0 0.0
    %594 = vmatprep.subr.mxu0 0.0
    %595 = vmatpush2.msra.mxu0 0.0
    %596 = vmatprep.subr.mxu0 0.0
    %597 = vmatpush2.msra.mxu0 0.0
    %598 = vmatprep.subr.mxu0 0.0
    %599 = vmatpush2.msra.mxu0 0.0
    %600 = vmatprep.mubr.f32.mxu0 0.0
    %v601 = vand.u32 %v68, 4294901760
    %v602 = vsub.f32 %v68, %v601
    %603 = vmatmul.mubr.f32.gmra.mxu0 %v602
    %v604 = vpop.f32.mrf.mxu0
    %v605 = vadd.f32 %v461, %v604
    %v606 = vpop.f32.mrf.mxu0
    %v607 = vadd.f32 %v463, %v606
    %608 = vmatprep.mubr.f32.mxu0 0.0
    %v609 = vand.u32 %v69, 4294901760
    %v610 = vsub.f32 %v69, %v609
    %611 = vmatmul.mubr.f32.gmra.mxu0 %v610
    %v612 = vpop.f32.mrf.mxu0
    %v613 = vadd.f32 %v468, %v612
    %v614 = vpop.f32.mrf.mxu0
    %v615 = vadd.f32 %v470, %v614
    %616 = vdwg.mxu0
    %v617 = vand.u32 %v101, 4294901760
    %618 = vmatprep.subr.mxu0 %v617
    %v619 = vand.u32 %v100, 4294901760
    %620 = vmatpush1.msra.mxu0 %v619
    %v621 = vand.u32 %v99, 4294901760
    %622 = vmatprep.subr.mxu0 %v621
    %v623 = vand.u32 %v98, 4294901760
    %624 = vmatpush1.msra.mxu0 %v623
    %v625 = vand.u32 %v97, 4294901760
    %626 = vmatprep.subr.mxu0 %v625
    %v627 = vand.u32 %v96, 4294901760
    %628 = vmatpush1.msra.mxu0 %v627
    %v629 = vand.u32 %v95, 4294901760
    %630 = vmatprep.subr.mxu0 %v629
    %v631 = vand.u32 %v94, 4294901760
    %632 = vmatpush1.msra.mxu0 %v631
    %v633 = vand.u32 %v93, 4294901760
    %634 = vmatprep.subr.mxu0 %v633
    %v635 = vand.u32 %v92, 4294901760
    %636 = vmatpush1.msra.mxu0 %v635
    %v637 = vand.u32 %v91, 4294901760
    %638 = vmatprep.subr.mxu0 %v637
    %v639 = vand.u32 %v90, 4294901760
    %640 = vmatpush1.msra.mxu0 %v639
    %v641 = vand.u32 %v89, 4294901760
    %642 = vmatprep.subr.mxu0 %v641
    %v643 = vand.u32 %v88, 4294901760
    %644 = vmatpush1.msra.mxu0 %v643
    %v645 = vand.u32 %v87, 4294901760
    %646 = vmatprep.subr.mxu0 %v645
    %v647 = vand.u32 %v86, 4294901760
    %648 = vmatpush1.msra.mxu0 %v647
    %v649 = vand.u32 %v85, 4294901760
    %650 = vmatprep.subr.mxu0 %v649
    %v651 = vand.u32 %v84, 4294901760
    %652 = vmatpush1.msra.mxu0 %v651
    %v653 = vand.u32 %v83, 4294901760
    %654 = vmatprep.subr.mxu0 %v653
    %v655 = vand.u32 %v82, 4294901760
    %656 = vmatpush1.msra.mxu0 %v655
    %v657 = vand.u32 %v81, 4294901760
    %658 = vmatprep.subr.mxu0 %v657
    %v659 = vand.u32 %v80, 4294901760
    %660 = vmatpush1.msra.mxu0 %v659
    %v661 = vand.u32 %v79, 4294901760
    %662 = vmatprep.subr.mxu0 %v661
    %v663 = vand.u32 %v78, 4294901760
    %664 = vmatpush1.msra.mxu0 %v663
    %v665 = vand.u32 %v77, 4294901760
    %666 = vmatprep.subr.mxu0 %v665
    %v667 = vand.u32 %v76, 4294901760
    %668 = vmatpush1.msra.mxu0 %v667
    %v669 = vand.u32 %v75, 4294901760
    %670 = vmatprep.subr.mxu0 %v669
    %v671 = vand.u32 %v74, 4294901760
    %672 = vmatpush1.msra.mxu0 %v671
    %v673 = vand.u32 %v73, 4294901760
    %674 = vmatprep.subr.mxu0 %v673
    %v675 = vand.u32 %v72, 4294901760
    %676 = vmatpush1.msra.mxu0 %v675
    %v677 = vand.u32 %v71, 4294901760
    %678 = vmatprep.subr.mxu0 %v677
    %v679 = vand.u32 %v70, 4294901760
    %680 = vmatpush1.msra.mxu0 %v679
    %681 = vmatprep.subr.mxu0 0.0
    %682 = vmatpush2.msra.mxu0 0.0
    %683 = vmatprep.subr.mxu0 0.0
    %684 = vmatpush2.msra.mxu0 0.0
    %685 = vmatprep.subr.mxu0 0.0
    %686 = vmatpush2.msra.mxu0 0.0
    %687 = vmatprep.subr.mxu0 0.0
    %688 = vmatpush2.msra.mxu0 0.0
    %689 = vmatprep.subr.mxu0 0.0
    %690 = vmatpush2.msra.mxu0 0.0
    %691 = vmatprep.subr.mxu0 0.0
    %692 = vmatpush2.msra.mxu0 0.0
    %693 = vmatprep.subr.mxu0 0.0
    %694 = vmatpush2.msra.mxu0 0.0
    %695 = vmatprep.subr.mxu0 0.0
    %696 = vmatpush2.msra.mxu0 0.0
    %697 = vmatprep.subr.mxu0 0.0
    %698 = vmatpush2.msra.mxu0 0.0
    %699 = vmatprep.subr.mxu0 0.0
    %700 = vmatpush2.msra.mxu0 0.0
    %701 = vmatprep.subr.mxu0 0.0
    %702 = vmatpush2.msra.mxu0 0.0
    %703 = vmatprep.subr.mxu0 0.0
    %704 = vmatpush2.msra.mxu0 0.0
    %705 = vmatprep.subr.mxu0 0.0
    %706 = vmatpush2.msra.mxu0 0.0
    %707 = vmatprep.subr.mxu0 0.0
    %708 = vmatpush2.msra.mxu0 0.0
    %709 = vmatprep.subr.mxu0 0.0
    %710 = vmatpush2.msra.mxu0 0.0
    %711 = vmatprep.subr.mxu0 0.0
    %712 = vmatpush2.msra.mxu0 0.0
    %713 = vmatprep.mubr.f32.mxu0 0.0
    %v714 = vand.u32 %v68, 4294901760
    %v715 = vsub.f32 %v68, %v714
    %v716 = vand.u32 %v715, 4294901760
    %717 = vmatmul.mubr.f32.gmra.mxu0 %v716
    %v718 = vpop.f32.mrf.mxu0
    %v719 = vadd.f32 %v605, %v718
    %v720 = vpop.f32.mrf.mxu0
    %v721 = vadd.f32 %v607, %v720
    %722 = vmatprep.mubr.f32.mxu0 0.0
    %v723 = vand.u32 %v69, 4294901760
    %v724 = vsub.f32 %v69, %v723
    %v725 = vand.u32 %v724, 4294901760
    %726 = vmatmul.mubr.f32.gmra.mxu0 %v725
    %v727 = vpop.f32.mrf.mxu0
    %v728 = vadd.f32 %v613, %v727
    %v729 = vpop.f32.mrf.mxu0
    %v730 = vadd.f32 %v615, %v729
    %731 = vdwg.mxu0
    %v732 = vand.u32 %v101, 4294901760
    %v733 = vsub.f32 %v101, %v732
    %v734 = vand.u32 %v733, 4294901760
    %735 = vmatprep.subr.mxu0 %v734
    %v736 = vand.u32 %v100, 4294901760
    %v737 = vsub.f32 %v100, %v736
    %v738 = vand.u32 %v737, 4294901760
    %739 = vmatpush1.msra.mxu0 %v738
    %v740 = vand.u32 %v99, 4294901760
    %v741 = vsub.f32 %v99, %v740
    %v742 = vand.u32 %v741, 4294901760
    %743 = vmatprep.subr.mxu0 %v742
    %v744 = vand.u32 %v98, 4294901760
    %v745 = vsub.f32 %v98, %v744
    %v746 = vand.u32 %v745, 4294901760
    %747 = vmatpush1.msra.mxu0 %v746
    %v748 = vand.u32 %v97, 4294901760
    %v749 = vsub.f32 %v97, %v748
    %v750 = vand.u32 %v749, 4294901760
    %751 = vmatprep.subr.mxu0 %v750
    %v752 = vand.u32 %v96, 4294901760
    %v753 = vsub.f32 %v96, %v752
    %v754 = vand.u32 %v753, 4294901760
    %755 = vmatpush1.msra.mxu0 %v754
    %v756 = vand.u32 %v95, 4294901760
    %v757 = vsub.f32 %v95, %v756
    %v758 = vand.u32 %v757, 4294901760
    %759 = vmatprep.subr.mxu0 %v758
    %v760 = vand.u32 %v94, 4294901760
    %v761 = vsub.f32 %v94, %v760
    %v762 = vand.u32 %v761, 4294901760
    %763 = vmatpush1.msra.mxu0 %v762
    %v764 = vand.u32 %v93, 4294901760
    %v765 = vsub.f32 %v93, %v764
    %v766 = vand.u32 %v765, 4294901760
    %767 = vmatprep.subr.mxu0 %v766
    %v768 = vand.u32 %v92, 4294901760
    %v769 = vsub.f32 %v92, %v768
    %v770 = vand.u32 %v769, 4294901760
    %771 = vmatpush1.msra.mxu0 %v770
    %v772 = vand.u32 %v91, 4294901760
    %v773 = vsub.f32 %v91, %v772
    %v774 = vand.u32 %v773, 4294901760
    %775 = vmatprep.subr.mxu0 %v774
    %v776 = vand.u32 %v90, 4294901760
    %v777 = vsub.f32 %v90, %v776
    %v778 = vand.u32 %v777, 4294901760
    %779 = vmatpush1.msra.mxu0 %v778
    %v780 = vand.u32 %v89, 4294901760
    %v781 = vsub.f32 %v89, %v780
    %v782 = vand.u32 %v781, 4294901760
    %783 = vmatprep.subr.mxu0 %v782
    %v784 = vand.u32 %v88, 4294901760
    %v785 = vsub.f32 %v88, %v784
    %v786 = vand.u32 %v785, 4294901760
    %787 = vmatpush1.msra.mxu0 %v786
    %v788 = vand.u32 %v87, 4294901760
    %v789 = vsub.f32 %v87, %v788
    %v790 = vand.u32 %v789, 4294901760
    %791 = vmatprep.subr.mxu0 %v790
    %v792 = vand.u32 %v86, 4294901760
    %v793 = vsub.f32 %v86, %v792
    %v794 = vand.u32 %v793, 4294901760
    %795 = vmatpush1.msra.mxu0 %v794
    %v796 = vand.u32 %v85, 4294901760
    %v797 = vsub.f32 %v85, %v796
    %v798 = vand.u32 %v797, 4294901760
    %799 = vmatprep.subr.mxu0 %v798
    %v800 = vand.u32 %v84, 4294901760
    %v801 = vsub.f32 %v84, %v800
    %v802 = vand.u32 %v801, 4294901760
    %803 = vmatpush1.msra.mxu0 %v802
    %v804 = vand.u32 %v83, 4294901760
    %v805 = vsub.f32 %v83, %v804
    %v806 = vand.u32 %v805, 4294901760
    %807 = vmatprep.subr.mxu0 %v806
    %v808 = vand.u32 %v82, 4294901760
    %v809 = vsub.f32 %v82, %v808
    %v810 = vand.u32 %v809, 4294901760
    %811 = vmatpush1.msra.mxu0 %v810
    %v812 = vand.u32 %v81, 4294901760
    %v813 = vsub.f32 %v81, %v812
    %v814 = vand.u32 %v813, 4294901760
    %815 = vmatprep.subr.mxu0 %v814
    %v816 = vand.u32 %v80, 4294901760
    %v817 = vsub.f32 %v80, %v816
    %v818 = vand.u32 %v817, 4294901760
    %819 = vmatpush1.msra.mxu0 %v818
    %v820 = vand.u32 %v79, 4294901760
    %v821 = vsub.f32 %v79, %v820
    %v822 = vand.u32 %v821, 4294901760
    %823 = vmatprep.subr.mxu0 %v822
    %v824 = vand.u32 %v78, 4294901760
    %v825 = vsub.f32 %v78, %v824
    %v826 = vand.u32 %v825, 4294901760
    %827 = vmatpush1.msra.mxu0 %v826
    %v828 = vand.u32 %v77, 4294901760
    %v829 = vsub.f32 %v77, %v828
    %v830 = vand.u32 %v829, 4294901760
    %831 = vmatprep.subr.mxu0 %v830
    %v832 = vand.u32 %v76, 4294901760
    %v833 = vsub.f32 %v76, %v832
    %v834 = vand.u32 %v833, 4294901760
    %835 = vmatpush1.msra.mxu0 %v834
    %v836 = vand.u32 %v75, 4294901760
    %v837 = vsub.f32 %v75, %v836
    %v838 = vand.u32 %v837, 4294901760
    %839 = vmatprep.subr.mxu0 %v838
    %v840 = vand.u32 %v74, 4294901760
    %v841 = vsub.f32 %v74, %v840
    %v842 = vand.u32 %v841, 4294901760
    %843 = vmatpush1.msra.mxu0 %v842
    %v844 = vand.u32 %v73, 4294901760
    %v845 = vsub.f32 %v73, %v844
    %v846 = vand.u32 %v845, 4294901760
    %847 = vmatprep.subr.mxu0 %v846
    %v848 = vand.u32 %v72, 4294901760
    %v849 = vsub.f32 %v72, %v848
    %v850 = vand.u32 %v849, 4294901760
    %851 = vmatpush1.msra.mxu0 %v850
    %v852 = vand.u32 %v71, 4294901760
    %v853 = vsub.f32 %v71, %v852
    %v854 = vand.u32 %v853, 4294901760
    %855 = vmatprep.subr.mxu0 %v854
    %v856 = vand.u32 %v70, 4294901760
    %v857 = vsub.f32 %v70, %v856
    %v858 = vand.u32 %v857, 4294901760
    %859 = vmatpush1.msra.mxu0 %v858
    %860 = vmatprep.subr.mxu0 0.0
    %861 = vmatpush2.msra.mxu0 0.0
    %862 = vmatprep.subr.mxu0 0.0
    %863 = vmatpush2.msra.mxu0 0.0
    %864 = vmatprep.subr.mxu0 0.0
    %865 = vmatpush2.msra.mxu0 0.0
    %866 = vmatprep.subr.mxu0 0.0
    %867 = vmatpush2.msra.mxu0 0.0
    %868 = vmatprep.subr.mxu0 0.0
    %869 = vmatpush2.msra.mxu0 0.0
    %870 = vmatprep.subr.mxu0 0.0
    %871 = vmatpush2.msra.mxu0 0.0
    %872 = vmatprep.subr.mxu0 0.0
    %873 = vmatpush2.msra.mxu0 0.0
    %874 = vmatprep.subr.mxu0 0.0
    %875 = vmatpush2.msra.mxu0 0.0
    %876 = vmatprep.subr.mxu0 0.0
    %877 = vmatpush2.msra.mxu0 0.0
    %878 = vmatprep.subr.mxu0 0.0
    %879 = vmatpush2.msra.mxu0 0.0
    %880 = vmatprep.subr.mxu0 0.0
    %881 = vmatpush2.msra.mxu0 0.0
    %882 = vmatprep.subr.mxu0 0.0
    %883 = vmatpush2.msra.mxu0 0.0
    %884 = vmatprep.subr.mxu0 0.0
    %885 = vmatpush2.msra.mxu0 0.0
    %886 = vmatprep.subr.mxu0 0.0
    %887 = vmatpush2.msra.mxu0 0.0
    %888 = vmatprep.subr.mxu0 0.0
    %889 = vmatpush2.msra.mxu0 0.0
    %890 = vmatprep.subr.mxu0 0.0
    %891 = vmatpush2.msra.mxu0 0.0
    %892 = vmatprep.mubr.f32.mxu0 0.0
    %v893 = vand.u32 %v68, 4294901760
    %894 = vmatmul.mubr.f32.gmra.mxu0 %v893
    %v895 = vpop.f32.mrf.mxu0
    %v896 = vadd.f32 %v719, %v895
    %v897 = vpop.f32.mrf.mxu0
    %v898 = vadd.f32 %v721, %v897
    %899 = vmatprep.mubr.f32.mxu0 0.0
    %v900 = vand.u32 %v69, 4294901760
    %901 = vmatmul.mubr.f32.gmra.mxu0 %v900
    %v902 = vpop.f32.mrf.mxu0
    %v903 = vadd.f32 %v728, %v902
    %v904 = vpop.f32.mrf.mxu0
    %v905 = vadd.f32 %v730, %v904
    %906 = vdwg.mxu0
    %v907 = vand.u32 %v101, 4294901760
    %908 = vmatprep.subr.mxu0 %v907
    %v909 = vand.u32 %v100, 4294901760
    %910 = vmatpush1.msra.mxu0 %v909
    %v911 = vand.u32 %v99, 4294901760
    %912 = vmatprep.subr.mxu0 %v911
    %v913 = vand.u32 %v98, 4294901760
    %914 = vmatpush1.msra.mxu0 %v913
    %v915 = vand.u32 %v97, 4294901760
    %916 = vmatprep.subr.mxu0 %v915
    %v917 = vand.u32 %v96, 4294901760
    %918 = vmatpush1.msra.mxu0 %v917
    %v919 = vand.u32 %v95, 4294901760
    %920 = vmatprep.subr.mxu0 %v919
    %v921 = vand.u32 %v94, 4294901760
    %922 = vmatpush1.msra.mxu0 %v921
    %v923 = vand.u32 %v93, 4294901760
    %924 = vmatprep.subr.mxu0 %v923
    %v925 = vand.u32 %v92, 4294901760
    %926 = vmatpush1.msra.mxu0 %v925
    %v927 = vand.u32 %v91, 4294901760
    %928 = vmatprep.subr.mxu0 %v927
    %v929 = vand.u32 %v90, 4294901760
    %930 = vmatpush1.msra.mxu0 %v929
    %v931 = vand.u32 %v89, 4294901760
    %932 = vmatprep.subr.mxu0 %v931
    %v933 = vand.u32 %v88, 4294901760
    %934 = vmatpush1.msra.mxu0 %v933
    %v935 = vand.u32 %v87, 4294901760
    %936 = vmatprep.subr.mxu0 %v935
    %v937 = vand.u32 %v86, 4294901760
    %938 = vmatpush1.msra.mxu0 %v937
    %v939 = vand.u32 %v85, 4294901760
    %940 = vmatprep.subr.mxu0 %v939
    %v941 = vand.u32 %v84, 4294901760
    %942 = vmatpush1.msra.mxu0 %v941
    %v943 = vand.u32 %v83, 4294901760
    %944 = vmatprep.subr.mxu0 %v943
    %v945 = vand.u32 %v82, 4294901760
    %946 = vmatpush1.msra.mxu0 %v945
    %v947 = vand.u32 %v81, 4294901760
    %948 = vmatprep.subr.mxu0 %v947
    %v949 = vand.u32 %v80, 4294901760
    %950 = vmatpush1.msra.mxu0 %v949
    %v951 = vand.u32 %v79, 4294901760
    %952 = vmatprep.subr.mxu0 %v951
    %v953 = vand.u32 %v78, 4294901760
    %954 = vmatpush1.msra.mxu0 %v953
    %v955 = vand.u32 %v77, 4294901760
    %956 = vmatprep.subr.mxu0 %v955
    %v957 = vand.u32 %v76, 4294901760
    %958 = vmatpush1.msra.mxu0 %v957
    %v959 = vand.u32 %v75, 4294901760
    %960 = vmatprep.subr.mxu0 %v959
    %v961 = vand.u32 %v74, 4294901760
    %962 = vmatpush1.msra.mxu0 %v961
    %v963 = vand.u32 %v73, 4294901760
    %964 = vmatprep.subr.mxu0 %v963
    %v965 = vand.u32 %v72, 4294901760
    %966 = vmatpush1.msra.mxu0 %v965
    %v967 = vand.u32 %v71, 4294901760
    %968 = vmatprep.subr.mxu0 %v967
    %v969 = vand.u32 %v70, 4294901760
    %970 = vmatpush1.msra.mxu0 %v969
    %971 = vmatprep.subr.mxu0 0.0
    %972 = vmatpush2.msra.mxu0 0.0
    %973 = vmatprep.subr.mxu0 0.0
    %974 = vmatpush2.msra.mxu0 0.0
    %975 = vmatprep.subr.mxu0 0.0
    %976 = vmatpush2.msra.mxu0 0.0
    %977 = vmatprep.subr.mxu0 0.0
    %978 = vmatpush2.msra.mxu0 0.0
    %979 = vmatprep.subr.mxu0 0.0
    %980 = vmatpush2.msra.mxu0 0.0
    %981 = vmatprep.subr.mxu0 0.0
    %982 = vmatpush2.msra.mxu0 0.0
    %983 = vmatprep.subr.mxu0 0.0
    %984 = vmatpush2.msra.mxu0 0.0
    %985 = vmatprep.subr.mxu0 0.0
    %986 = vmatpush2.msra.mxu0 0.0
    %987 = vmatprep.subr.mxu0 0.0
    %988 = vmatpush2.msra.mxu0 0.0
    %989 = vmatprep.subr.mxu0 0.0
    %990 = vmatpush2.msra.mxu0 0.0
    %991 = vmatprep.subr.mxu0 0.0
    %992 = vmatpush2.msra.mxu0 0.0
    %993 = vmatprep.subr.mxu0 0.0
    %994 = vmatpush2.msra.mxu0 0.0
    %995 = vmatprep.subr.mxu0 0.0
    %996 = vmatpush2.msra.mxu0 0.0
    %997 = vmatprep.subr.mxu0 0.0
    %998 = vmatpush2.msra.mxu0 0.0
    %999 = vmatprep.subr.mxu0 0.0
    %1000 = vmatpush2.msra.mxu0 0.0
    %1001 = vmatprep.subr.mxu0 0.0
    %1002 = vmatpush2.msra.mxu0 0.0
    %1003 = vmatprep.mubr.f32.mxu0 0.0
    %v1004 = vand.u32 %v68, 4294901760
    %1005 = vmatmul.mubr.f32.gmra.mxu0 %v1004
    %v1006 = vpop.f32.mrf.mxu0
    %v1007 = vadd.f32 %v896, %v1006
    %v1008 = vpop.f32.mrf.mxu0
    %v1009 = vadd.f32 %v898, %v1008
    %1010 = vmatprep.mubr.f32.mxu0 0.0
    %v1011 = vand.u32 %v69, 4294901760
    %1012 = vmatmul.mubr.f32.gmra.mxu0 %v1011
    %v1013 = vpop.f32.mrf.mxu0
    %v1014 = vadd.f32 %v903, %v1013
    %v1015 = vpop.f32.mrf.mxu0
    %v1016 = vadd.f32 %v905, %v1015
    %1017 = vdwg.mxu0
    %v1018 = vmax.f32 %v1007, 0.0
    %v1019 = vmax.f32 %v1014, 0.0
    %v1020 = vld [vmem:[#allocation5] sm:$0xff]
    %v1021 = vld [vmem:[#allocation5 + $0x8] sm:$0xff]
    %v1022 = vld [vmem:[#allocation5 + $0x10] sm:$0xff]
    %v1023 = vld [vmem:[#allocation5 + $0x18] sm:$0xff]
    %v1024 = vld [vmem:[#allocation5 + $0x20] sm:$0xff]
    %v1025 = vld [vmem:[#allocation5 + $0x28] sm:$0xff]
    %v1026 = vld [vmem:[#allocation5 + $0x30] sm:$0xff]
    %v1027 = vld [vmem:[#allocation5 + $0x38] sm:$0xff]
    %v1028 = vld [vmem:[#allocation5 + $0x40] sm:$0xff]
    %v1029 = vld [vmem:[#allocation5 + $0x48] sm:$0xff]
    %v1030 = vld [vmem:[#allocation5 + $0x50] sm:$0xff]
    %v1031 = vld [vmem:[#allocation5 + $0x58] sm:$0xff]
    %v1032 = vld [vmem:[#allocation5 + $0x60] sm:$0xff]
    %v1033 = vld [vmem:[#allocation5 + $0x68] sm:$0xff]
    %v1034 = vld [vmem:[#allocation5 + $0x70] sm:$0xff]
    %v1035 = vld [vmem:[#allocation5 + $0x78] sm:$0xff]
    %v1036 = vld [vmem:[%s4] sm:$0x1]
    %v1038 = vlaneseq
    %v1039 = vshrl.u32 %v1038, 7
    %v1040 = vsub.s32 0, %v1039
    %v1041 = vrot.slane %v1036, %v1040
    %1043 = vmatprep.subr.mxu0 0.0
    %v1044 = vand.u32 %v1035, 4294901760
    %1045 = vmatpush1.msra.mxu0 %v1044
    %1046 = vmatprep.subr.mxu0 0.0
    %v1047 = vand.u32 %v1034, 4294901760
    %1048 = vmatpush1.msra.mxu0 %v1047
    %1049 = vmatprep.subr.mxu0 0.0
    %v1050 = vand.u32 %v1033, 4294901760
    %1051 = vmatpush1.msra.mxu0 %v1050
    %1052 = vmatprep.subr.mxu0 0.0
    %v1053 = vand.u32 %v1032, 4294901760
    %1054 = vmatpush1.msra.mxu0 %v1053
    %1055 = vmatprep.subr.mxu0 0.0
    %v1056 = vand.u32 %v1031, 4294901760
    %1057 = vmatpush1.msra.mxu0 %v1056
    %1058 = vmatprep.subr.mxu0 0.0
    %v1059 = vand.u32 %v1030, 4294901760
    %1060 = vmatpush1.msra.mxu0 %v1059
    %1061 = vmatprep.subr.mxu0 0.0
    %v1062 = vand.u32 %v1029, 4294901760
    %1063 = vmatpush1.msra.mxu0 %v1062
    %1064 = vmatprep.subr.mxu0 0.0
    %v1065 = vand.u32 %v1028, 4294901760
    %1066 = vmatpush1.msra.mxu0 %v1065
    %1067 = vmatprep.subr.mxu0 0.0
    %v1068 = vand.u32 %v1027, 4294901760
    %1069 = vmatpush1.msra.mxu0 %v1068
    %1070 = vmatprep.subr.mxu0 0.0
    %v1071 = vand.u32 %v1026, 4294901760
    %1072 = vmatpush1.msra.mxu0 %v1071
    %1073 = vmatprep.subr.mxu0 0.0
    %v1074 = vand.u32 %v1025, 4294901760
    %1075 = vmatpush1.msra.mxu0 %v1074
    %1076 = vmatprep.subr.mxu0 0.0
    %v1077 = vand.u32 %v1024, 4294901760
    %1078 = vmatpush1.msra.mxu0 %v1077
    %1079 = vmatprep.subr.mxu0 0.0
    %v1080 = vand.u32 %v1023, 4294901760
    %1081 = vmatpush1.msra.mxu0 %v1080
    %1082 = vmatprep.subr.mxu0 0.0
    %v1083 = vand.u32 %v1022, 4294901760
    %1084 = vmatpush1.msra.mxu0 %v1083
    %1085 = vmatprep.subr.mxu0 0.0
    %v1086 = vand.u32 %v1021, 4294901760
    %1087 = vmatpush1.msra.mxu0 %v1086
    %1088 = vmatprep.subr.mxu0 0.0
    %v1089 = vand.u32 %v1020, 4294901760
    %1090 = vmatpush1.msra.mxu0 %v1089
    %1091 = vmatprep.subr.mxu0 0.0
    %1092 = vmatpush2.msra.mxu0 0.0
    %1093 = vmatprep.subr.mxu0 0.0
    %1094 = vmatpush2.msra.mxu0 0.0
    %1095 = vmatprep.subr.mxu0 0.0
    %1096 = vmatpush2.msra.mxu0 0.0
    %1097 = vmatprep.subr.mxu0 0.0
    %1098 = vmatpush2.msra.mxu0 0.0
    %1099 = vmatprep.subr.mxu0 0.0
    %1100 = vmatpush2.msra.mxu0 0.0
    %1101 = vmatprep.subr.mxu0 0.0
    %1102 = vmatpush2.msra.mxu0 0.0
    %1103 = vmatprep.subr.mxu0 0.0
    %1104 = vmatpush2.msra.mxu0 0.0
    %1105 = vmatprep.subr.mxu0 0.0
    %1106 = vmatpush2.msra.mxu0 0.0
    %1107 = vmatprep.subr.mxu0 0.0
    %1108 = vmatpush2.msra.mxu0 0.0
    %1109 = vmatprep.subr.mxu0 0.0
    %1110 = vmatpush2.msra.mxu0 0.0
    %1111 = vmatprep.subr.mxu0 0.0
    %1112 = vmatpush2.msra.mxu0 0.0
    %1113 = vmatprep.subr.mxu0 0.0
    %1114 = vmatpush2.msra.mxu0 0.0
    %1115 = vmatprep.subr.mxu0 0.0
    %1116 = vmatpush2.msra.mxu0 0.0
    %1117 = vmatprep.subr.mxu0 0.0
    %1118 = vmatpush2.msra.mxu0 0.0
    %1119 = vmatprep.subr.mxu0 0.0
    %1120 = vmatpush2.msra.mxu0 0.0
    %1121 = vmatprep.subr.mxu0 0.0
    %1122 = vmatpush2.msra.mxu0 0.0
    %1123 = vmatprep.mubr.f32.mxu0 0.0
    %v1124 = vand.u32 %v1018, 4294901760
    %v1125 = vsub.f32 %v1018, %v1124
    %v1126 = vand.u32 %v1125, 4294901760
    %v1127 = vsub.f32 %v1125, %v1126
    %v1128 = vand.u32 %v1127, 4294901760
    %1129 = vmatmul.mubr.f32.gmra.mxu0 %v1128
    %v1130 = vpop.f32.mrf.mxu0
    %v1131 = vadd.f32 %v1041, %v1130
    %v1132 = vpop.f32.mrf.mxu0
    %1133 = vmatprep.mubr.f32.mxu0 0.0
    %v1134 = vand.u32 %v1019, 4294901760
    %v1135 = vsub.f32 %v1019, %v1134
    %v1136 = vand.u32 %v1135, 4294901760
    %v1137 = vsub.f32 %v1135, %v1136
    %v1138 = vand.u32 %v1137, 4294901760
    %1139 = vmatmul.mubr.f32.gmra.mxu0 %v1138
    %v1140 = vpop.f32.mrf.mxu0
    %v1141 = vadd.f32 %v1041, %v1140
    %v1142 = vpop.f32.mrf.mxu0
    %1143 = vdwg.mxu0
    %1144 = vmatprep.subr.mxu0 0.0
    %v1145 = vand.u32 %v1035, 4294901760
    %v1146 = vsub.f32 %v1035, %v1145
    %v1147 = vand.u32 %v1146, 4294901760
    %v1148 = vsub.f32 %v1146, %v1147
    %v1149 = vand.u32 %v1148, 4294901760
    %1150 = vmatpush1.msra.mxu0 %v1149
    %1151 = vmatprep.subr.mxu0 0.0
    %v1152 = vand.u32 %v1034, 4294901760
    %v1153 = vsub.f32 %v1034, %v1152
    %v1154 = vand.u32 %v1153, 4294901760
    %v1155 = vsub.f32 %v1153, %v1154
    %v1156 = vand.u32 %v1155, 4294901760
    %1157 = vmatpush1.msra.mxu0 %v1156
    %1158 = vmatprep.subr.mxu0 0.0
    %v1159 = vand.u32 %v1033, 4294901760
    %v1160 = vsub.f32 %v1033, %v1159
    %v1161 = vand.u32 %v1160, 4294901760
    %v1162 = vsub.f32 %v1160, %v1161
    %v1163 = vand.u32 %v1162, 4294901760
    %1164 = vmatpush1.msra.mxu0 %v1163
    %1165 = vmatprep.subr.mxu0 0.0
    %v1166 = vand.u32 %v1032, 4294901760
    %v1167 = vsub.f32 %v1032, %v1166
    %v1168 = vand.u32 %v1167, 4294901760
    %v1169 = vsub.f32 %v1167, %v1168
    %v1170 = vand.u32 %v1169, 4294901760
    %1171 = vmatpush1.msra.mxu0 %v1170
    %1172 = vmatprep.subr.mxu0 0.0
    %v1173 = vand.u32 %v1031, 4294901760
    %v1174 = vsub.f32 %v1031, %v1173
    %v1175 = vand.u32 %v1174, 4294901760
    %v1176 = vsub.f32 %v1174, %v1175
    %v1177 = vand.u32 %v1176, 4294901760
    %1178 = vmatpush1.msra.mxu0 %v1177
    %1179 = vmatprep.subr.mxu0 0.0
    %v1180 = vand.u32 %v1030, 4294901760
    %v1181 = vsub.f32 %v1030, %v1180
    %v1182 = vand.u32 %v1181, 4294901760
    %v1183 = vsub.f32 %v1181, %v1182
    %v1184 = vand.u32 %v1183, 4294901760
    %1185 = vmatpush1.msra.mxu0 %v1184
    %1186 = vmatprep.subr.mxu0 0.0
    %v1187 = vand.u32 %v1029, 4294901760
    %v1188 = vsub.f32 %v1029, %v1187
    %v1189 = vand.u32 %v1188, 4294901760
    %v1190 = vsub.f32 %v1188, %v1189
    %v1191 = vand.u32 %v1190, 4294901760
    %1192 = vmatpush1.msra.mxu0 %v1191
    %1193 = vmatprep.subr.mxu0 0.0
    %v1194 = vand.u32 %v1028, 4294901760
    %v1195 = vsub.f32 %v1028, %v1194
    %v1196 = vand.u32 %v1195, 4294901760
    %v1197 = vsub.f32 %v1195, %v1196
    %v1198 = vand.u32 %v1197, 4294901760
    %1199 = vmatpush1.msra.mxu0 %v1198
    %1200 = vmatprep.subr.mxu0 0.0
    %v1201 = vand.u32 %v1027, 4294901760
    %v1202 = vsub.f32 %v1027, %v1201
    %v1203 = vand.u32 %v1202, 4294901760
    %v1204 = vsub.f32 %v1202, %v1203
    %v1205 = vand.u32 %v1204, 4294901760
    %1206 = vmatpush1.msra.mxu0 %v1205
    %1207 = vmatprep.subr.mxu0 0.0
    %v1208 = vand.u32 %v1026, 4294901760
    %v1209 = vsub.f32 %v1026, %v1208
    %v1210 = vand.u32 %v1209, 4294901760
    %v1211 = vsub.f32 %v1209, %v1210
    %v1212 = vand.u32 %v1211, 4294901760
    %1213 = vmatpush1.msra.mxu0 %v1212
    %1214 = vmatprep.subr.mxu0 0.0
    %v1215 = vand.u32 %v1025, 4294901760
    %v1216 = vsub.f32 %v1025, %v1215
    %v1217 = vand.u32 %v1216, 4294901760
    %v1218 = vsub.f32 %v1216, %v1217
    %v1219 = vand.u32 %v1218, 4294901760
    %1220 = vmatpush1.msra.mxu0 %v1219
    %1221 = vmatprep.subr.mxu0 0.0
    %v1222 = vand.u32 %v1024, 4294901760
    %v1223 = vsub.f32 %v1024, %v1222
    %v1224 = vand.u32 %v1223, 4294901760
    %v1225 = vsub.f32 %v1223, %v1224
    %v1226 = vand.u32 %v1225, 4294901760
    %1227 = vmatpush1.msra.mxu0 %v1226
    %1228 = vmatprep.subr.mxu0 0.0
    %v1229 = vand.u32 %v1023, 4294901760
    %v1230 = vsub.f32 %v1023, %v1229
    %v1231 = vand.u32 %v1230, 4294901760
    %v1232 = vsub.f32 %v1230, %v1231
    %v1233 = vand.u32 %v1232, 4294901760
    %1234 = vmatpush1.msra.mxu0 %v1233
    %1235 = vmatprep.subr.mxu0 0.0
    %v1236 = vand.u32 %v1022, 4294901760
    %v1237 = vsub.f32 %v1022, %v1236
    %v1238 = vand.u32 %v1237, 4294901760
    %v1239 = vsub.f32 %v1237, %v1238
    %v1240 = vand.u32 %v1239, 4294901760
    %1241 = vmatpush1.msra.mxu0 %v1240
    %1242 = vmatprep.subr.mxu0 0.0
    %v1243 = vand.u32 %v1021, 4294901760
    %v1244 = vsub.f32 %v1021, %v1243
    %v1245 = vand.u32 %v1244, 4294901760
    %v1246 = vsub.f32 %v1244, %v1245
    %v1247 = vand.u32 %v1246, 4294901760
    %1248 = vmatpush1.msra.mxu0 %v1247
    %1249 = vmatprep.subr.mxu0 0.0
    %v1250 = vand.u32 %v1020, 4294901760
    %v1251 = vsub.f32 %v1020, %v1250
    %v1252 = vand.u32 %v1251, 4294901760
    %v1253 = vsub.f32 %v1251, %v1252
    %v1254 = vand.u32 %v1253, 4294901760
    %1255 = vmatpush1.msra.mxu0 %v1254
    %1256 = vmatprep.subr.mxu0 0.0
    %1257 = vmatpush2.msra.mxu0 0.0
    %1258 = vmatprep.subr.mxu0 0.0
    %1259 = vmatpush2.msra.mxu0 0.0
    %1260 = vmatprep.subr.mxu0 0.0
    %1261 = vmatpush2.msra.mxu0 0.0
    %1262 = vmatprep.subr.mxu0 0.0
    %1263 = vmatpush2.msra.mxu0 0.0
    %1264 = vmatprep.subr.mxu0 0.0
    %1265 = vmatpush2.msra.mxu0 0.0
    %1266 = vmatprep.subr.mxu0 0.0
    %1267 = vmatpush2.msra.mxu0 0.0
    %1268 = vmatprep.subr.mxu0 0.0
    %1269 = vmatpush2.msra.mxu0 0.0
    %1270 = vmatprep.subr.mxu0 0.0
    %1271 = vmatpush2.msra.mxu0 0.0
    %1272 = vmatprep.subr.mxu0 0.0
    %1273 = vmatpush2.msra.mxu0 0.0
    %1274 = vmatprep.subr.mxu0 0.0
    %1275 = vmatpush2.msra.mxu0 0.0
    %1276 = vmatprep.subr.mxu0 0.0
    %1277 = vmatpush2.msra.mxu0 0.0
    %1278 = vmatprep.subr.mxu0 0.0
    %1279 = vmatpush2.msra.mxu0 0.0
    %1280 = vmatprep.subr.mxu0 0.0
    %1281 = vmatpush2.msra.mxu0 0.0
    %1282 = vmatprep.subr.mxu0 0.0
    %1283 = vmatpush2.msra.mxu0 0.0
    %1284 = vmatprep.subr.mxu0 0.0
    %1285 = vmatpush2.msra.mxu0 0.0
    %1286 = vmatprep.subr.mxu0 0.0
    %1287 = vmatpush2.msra.mxu0 0.0
    %1288 = vmatprep.mubr.f32.mxu0 0.0
    %v1289 = vand.u32 %v1018, 4294901760
    %1290 = vmatmul.mubr.f32.gmra.mxu0 %v1289
    %v1291 = vpop.f32.mrf.mxu0
    %v1292 = vadd.f32 %v1131, %v1291
    %v1293 = vpop.f32.mrf.mxu0
    %1294 = vmatprep.mubr.f32.mxu0 0.0
    %v1295 = vand.u32 %v1019, 4294901760
    %1296 = vmatmul.mubr.f32.gmra.mxu0 %v1295
    %v1297 = vpop.f32.mrf.mxu0
    %v1298 = vadd.f32 %v1141, %v1297
    %v1299 = vpop.f32.mrf.mxu0
    %1300 = vdwg.mxu0
    %1301 = vmatprep.subr.mxu0 0.0
    %v1302 = vand.u32 %v1035, 4294901760
    %v1303 = vsub.f32 %v1035, %v1302
    %1304 = vmatpush1.msra.mxu0 %v1303
    %1305 = vmatprep.subr.mxu0 0.0
    %v1306 = vand.u32 %v1034, 4294901760
    %v1307 = vsub.f32 %v1034, %v1306
    %1308 = vmatpush1.msra.mxu0 %v1307
    %1309 = vmatprep.subr.mxu0 0.0
    %v1310 = vand.u32 %v1033, 4294901760
    %v1311 = vsub.f32 %v1033, %v1310
    %1312 = vmatpush1.msra.mxu0 %v1311
    %1313 = vmatprep.subr.mxu0 0.0
    %v1314 = vand.u32 %v1032, 4294901760
    %v1315 = vsub.f32 %v1032, %v1314
    %1316 = vmatpush1.msra.mxu0 %v1315
    %1317 = vmatprep.subr.mxu0 0.0
    %v1318 = vand.u32 %v1031, 4294901760
    %v1319 = vsub.f32 %v1031, %v1318
    %1320 = vmatpush1.msra.mxu0 %v1319
    %1321 = vmatprep.subr.mxu0 0.0
    %v1322 = vand.u32 %v1030, 4294901760
    %v1323 = vsub.f32 %v1030, %v1322
    %1324 = vmatpush1.msra.mxu0 %v1323
    %1325 = vmatprep.subr.mxu0 0.0
    %v1326 = vand.u32 %v1029, 4294901760
    %v1327 = vsub.f32 %v1029, %v1326
    %1328 = vmatpush1.msra.mxu0 %v1327
    %1329 = vmatprep.subr.mxu0 0.0
    %v1330 = vand.u32 %v1028, 4294901760
    %v1331 = vsub.f32 %v1028, %v1330
    %1332 = vmatpush1.msra.mxu0 %v1331
    %1333 = vmatprep.subr.mxu0 0.0
    %v1334 = vand.u32 %v1027, 4294901760
    %v1335 = vsub.f32 %v1027, %v1334
    %1336 = vmatpush1.msra.mxu0 %v1335
    %1337 = vmatprep.subr.mxu0 0.0
    %v1338 = vand.u32 %v1026, 4294901760
    %v1339 = vsub.f32 %v1026, %v1338
    %1340 = vmatpush1.msra.mxu0 %v1339
    %1341 = vmatprep.subr.mxu0 0.0
    %v1342 = vand.u32 %v1025, 4294901760
    %v1343 = vsub.f32 %v1025, %v1342
    %1344 = vmatpush1.msra.mxu0 %v1343
    %1345 = vmatprep.subr.mxu0 0.0
    %v1346 = vand.u32 %v1024, 4294901760
    %v1347 = vsub.f32 %v1024, %v1346
    %1348 = vmatpush1.msra.mxu0 %v1347
    %1349 = vmatprep.subr.mxu0 0.0
    %v1350 = vand.u32 %v1023, 4294901760
    %v1351 = vsub.f32 %v1023, %v1350
    %1352 = vmatpush1.msra.mxu0 %v1351
    %1353 = vmatprep.subr.mxu0 0.0
    %v1354 = vand.u32 %v1022, 4294901760
    %v1355 = vsub.f32 %v1022, %v1354
    %1356 = vmatpush1.msra.mxu0 %v1355
    %1357 = vmatprep.subr.mxu0 0.0
    %v1358 = vand.u32 %v1021, 4294901760
    %v1359 = vsub.f32 %v1021, %v1358
    %1360 = vmatpush1.msra.mxu0 %v1359
    %1361 = vmatprep.subr.mxu0 0.0
    %v1362 = vand.u32 %v1020, 4294901760
    %v1363 = vsub.f32 %v1020, %v1362
    %1364 = vmatpush1.msra.mxu0 %v1363
    %1365 = vmatprep.subr.mxu0 0.0
    %1366 = vmatpush2.msra.mxu0 0.0
    %1367 = vmatprep.subr.mxu0 0.0
    %1368 = vmatpush2.msra.mxu0 0.0
    %1369 = vmatprep.subr.mxu0 0.0
    %1370 = vmatpush2.msra.mxu0 0.0
    %1371 = vmatprep.subr.mxu0 0.0
    %1372 = vmatpush2.msra.mxu0 0.0
    %1373 = vmatprep.subr.mxu0 0.0
    %1374 = vmatpush2.msra.mxu0 0.0
    %1375 = vmatprep.subr.mxu0 0.0
    %1376 = vmatpush2.msra.mxu0 0.0
    %1377 = vmatprep.subr.mxu0 0.0
    %1378 = vmatpush2.msra.mxu0 0.0
    %1379 = vmatprep.subr.mxu0 0.0
    %1380 = vmatpush2.msra.mxu0 0.0
    %1381 = vmatprep.subr.mxu0 0.0
    %1382 = vmatpush2.msra.mxu0 0.0
    %1383 = vmatprep.subr.mxu0 0.0
    %1384 = vmatpush2.msra.mxu0 0.0
    %1385 = vmatprep.subr.mxu0 0.0
    %1386 = vmatpush2.msra.mxu0 0.0
    %1387 = vmatprep.subr.mxu0 0.0
    %1388 = vmatpush2.msra.mxu0 0.0
    %1389 = vmatprep.subr.mxu0 0.0
    %1390 = vmatpush2.msra.mxu0 0.0
    %1391 = vmatprep.subr.mxu0 0.0
    %1392 = vmatpush2.msra.mxu0 0.0
    %1393 = vmatprep.subr.mxu0 0.0
    %1394 = vmatpush2.msra.mxu0 0.0
    %1395 = vmatprep.subr.mxu0 0.0
    %1396 = vmatpush2.msra.mxu0 0.0
    %1397 = vmatprep.mubr.f32.mxu0 0.0
    %v1398 = vand.u32 %v1018, 4294901760
    %v1399 = vsub.f32 %v1018, %v1398
    %1400 = vmatmul.mubr.f32.gmra.mxu0 %v1399
    %v1401 = vpop.f32.mrf.mxu0
    %v1402 = vadd.f32 %v1292, %v1401
    %v1403 = vpop.f32.mrf.mxu0
    %1404 = vmatprep.mubr.f32.mxu0 0.0
    %v1405 = vand.u32 %v1019, 4294901760
    %v1406 = vsub.f32 %v1019, %v1405
    %1407 = vmatmul.mubr.f32.gmra.mxu0 %v1406
    %v1408 = vpop.f32.mrf.mxu0
    %v1409 = vadd.f32 %v1298, %v1408
    %v1410 = vpop.f32.mrf.mxu0
    %1411 = vdwg.mxu0
    %1412 = vmatprep.subr.mxu0 0.0
    %v1413 = vand.u32 %v1035, 4294901760
    %1414 = vmatpush1.msra.mxu0 %v1413
    %1415 = vmatprep.subr.mxu0 0.0
    %v1416 = vand.u32 %v1034, 4294901760
    %1417 = vmatpush1.msra.mxu0 %v1416
    %1418 = vmatprep.subr.mxu0 0.0
    %v1419 = vand.u32 %v1033, 4294901760
    %1420 = vmatpush1.msra.mxu0 %v1419
    %1421 = vmatprep.subr.mxu0 0.0
    %v1422 = vand.u32 %v1032, 4294901760
    %1423 = vmatpush1.msra.mxu0 %v1422
    %1424 = vmatprep.subr.mxu0 0.0
    %v1425 = vand.u32 %v1031, 4294901760
    %1426 = vmatpush1.msra.mxu0 %v1425
    %1427 = vmatprep.subr.mxu0 0.0
    %v1428 = vand.u32 %v1030, 4294901760
    %1429 = vmatpush1.msra.mxu0 %v1428
    %1430 = vmatprep.subr.mxu0 0.0
    %v1431 = vand.u32 %v1029, 4294901760
    %1432 = vmatpush1.msra.mxu0 %v1431
    %1433 = vmatprep.subr.mxu0 0.0
    %v1434 = vand.u32 %v1028, 4294901760
    %1435 = vmatpush1.msra.mxu0 %v1434
    %1436 = vmatprep.subr.mxu0 0.0
    %v1437 = vand.u32 %v1027, 4294901760
    %1438 = vmatpush1.msra.mxu0 %v1437
    %1439 = vmatprep.subr.mxu0 0.0
    %v1440 = vand.u32 %v1026, 4294901760
    %1441 = vmatpush1.msra.mxu0 %v1440
    %1442 = vmatprep.subr.mxu0 0.0
    %v1443 = vand.u32 %v1025, 4294901760
    %1444 = vmatpush1.msra.mxu0 %v1443
    %1445 = vmatprep.subr.mxu0 0.0
    %v1446 = vand.u32 %v1024, 4294901760
    %1447 = vmatpush1.msra.mxu0 %v1446
    %1448 = vmatprep.subr.mxu0 0.0
    %v1449 = vand.u32 %v1023, 4294901760
    %1450 = vmatpush1.msra.mxu0 %v1449
    %1451 = vmatprep.subr.mxu0 0.0
    %v1452 = vand.u32 %v1022, 4294901760
    %1453 = vmatpush1.msra.mxu0 %v1452
    %1454 = vmatprep.subr.mxu0 0.0
    %v1455 = vand.u32 %v1021, 4294901760
    %1456 = vmatpush1.msra.mxu0 %v1455
    %1457 = vmatprep.subr.mxu0 0.0
    %v1458 = vand.u32 %v1020, 4294901760
    %1459 = vmatpush1.msra.mxu0 %v1458
    %1460 = vmatprep.subr.mxu0 0.0
    %1461 = vmatpush2.msra.mxu0 0.0
    %1462 = vmatprep.subr.mxu0 0.0
    %1463 = vmatpush2.msra.mxu0 0.0
    %1464 = vmatprep.subr.mxu0 0.0
    %1465 = vmatpush2.msra.mxu0 0.0
    %1466 = vmatprep.subr.mxu0 0.0
    %1467 = vmatpush2.msra.mxu0 0.0
    %1468 = vmatprep.subr.mxu0 0.0
    %1469 = vmatpush2.msra.mxu0 0.0
    %1470 = vmatprep.subr.mxu0 0.0
    %1471 = vmatpush2.msra.mxu0 0.0
    %1472 = vmatprep.subr.mxu0 0.0
    %1473 = vmatpush2.msra.mxu0 0.0
    %1474 = vmatprep.subr.mxu0 0.0
    %1475 = vmatpush2.msra.mxu0 0.0
    %1476 = vmatprep.subr.mxu0 0.0
    %1477 = vmatpush2.msra.mxu0 0.0
    %1478 = vmatprep.subr.mxu0 0.0
    %1479 = vmatpush2.msra.mxu0 0.0
    %1480 = vmatprep.subr.mxu0 0.0
    %1481 = vmatpush2.msra.mxu0 0.0
    %1482 = vmatprep.subr.mxu0 0.0
    %1483 = vmatpush2.msra.mxu0 0.0
    %1484 = vmatprep.subr.mxu0 0.0
    %1485 = vmatpush2.msra.mxu0 0.0
    %1486 = vmatprep.subr.mxu0 0.0
    %1487 = vmatpush2.msra.mxu0 0.0
    %1488 = vmatprep.subr.mxu0 0.0
    %1489 = vmatpush2.msra.mxu0 0.0
    %1490 = vmatprep.subr.mxu0 0.0
    %1491 = vmatpush2.msra.mxu0 0.0
    %1492 = vmatprep.mubr.f32.mxu0 0.0
    %v1493 = vand.u32 %v1018, 4294901760
    %v1494 = vsub.f32 %v1018, %v1493
    %v1495 = vand.u32 %v1494, 4294901760
    %1496 = vmatmul.mubr.f32.gmra.mxu0 %v1495
    %v1497 = vpop.f32.mrf.mxu0
    %v1498 = vadd.f32 %v1402, %v1497
    %v1499 = vpop.f32.mrf.mxu0
    %1500 = vmatprep.mubr.f32.mxu0 0.0
    %v1501 = vand.u32 %v1019, 4294901760
    %v1502 = vsub.f32 %v1019, %v1501
    %v1503 = vand.u32 %v1502, 4294901760
    %1504 = vmatmul.mubr.f32.gmra.mxu0 %v1503
    %v1505 = vpop.f32.mrf.mxu0
    %v1506 = vadd.f32 %v1409, %v1505
    %v1507 = vpop.f32.mrf.mxu0
    %1508 = vdwg.mxu0
    %1509 = vmatprep.subr.mxu0 0.0
    %v1510 = vand.u32 %v1035, 4294901760
    %v1511 = vsub.f32 %v1035, %v1510
    %v1512 = vand.u32 %v1511, 4294901760
    %1513 = vmatpush1.msra.mxu0 %v1512
    %1514 = vmatprep.subr.mxu0 0.0
    %v1515 = vand.u32 %v1034, 4294901760
    %v1516 = vsub.f32 %v1034, %v1515
    %v1517 = vand.u32 %v1516, 4294901760
    %1518 = vmatpush1.msra.mxu0 %v1517
    %1519 = vmatprep.subr.mxu0 0.0
    %v1520 = vand.u32 %v1033, 4294901760
    %v1521 = vsub.f32 %v1033, %v1520
    %v1522 = vand.u32 %v1521, 4294901760
    %1523 = vmatpush1.msra.mxu0 %v1522
    %1524 = vmatprep.subr.mxu0 0.0
    %v1525 = vand.u32 %v1032, 4294901760
    %v1526 = vsub.f32 %v1032, %v1525
    %v1527 = vand.u32 %v1526, 4294901760
    %1528 = vmatpush1.msra.mxu0 %v1527
    %1529 = vmatprep.subr.mxu0 0.0
    %v1530 = vand.u32 %v1031, 4294901760
    %v1531 = vsub.f32 %v1031, %v1530
    %v1532 = vand.u32 %v1531, 4294901760
    %1533 = vmatpush1.msra.mxu0 %v1532
    %1534 = vmatprep.subr.mxu0 0.0
    %v1535 = vand.u32 %v1030, 4294901760
    %v1536 = vsub.f32 %v1030, %v1535
    %v1537 = vand.u32 %v1536, 4294901760
    %1538 = vmatpush1.msra.mxu0 %v1537
    %1539 = vmatprep.subr.mxu0 0.0
    %v1540 = vand.u32 %v1029, 4294901760
    %v1541 = vsub.f32 %v1029, %v1540
    %v1542 = vand.u32 %v1541, 4294901760
    %1543 = vmatpush1.msra.mxu0 %v1542
    %1544 = vmatprep.subr.mxu0 0.0
    %v1545 = vand.u32 %v1028, 4294901760
    %v1546 = vsub.f32 %v1028, %v1545
    %v1547 = vand.u32 %v1546, 4294901760
    %1548 = vmatpush1.msra.mxu0 %v1547
    %1549 = vmatprep.subr.mxu0 0.0
    %v1550 = vand.u32 %v1027, 4294901760
    %v1551 = vsub.f32 %v1027, %v1550
    %v1552 = vand.u32 %v1551, 4294901760
    %1553 = vmatpush1.msra.mxu0 %v1552
    %1554 = vmatprep.subr.mxu0 0.0
    %v1555 = vand.u32 %v1026, 4294901760
    %v1556 = vsub.f32 %v1026, %v1555
    %v1557 = vand.u32 %v1556, 4294901760
    %1558 = vmatpush1.msra.mxu0 %v1557
    %1559 = vmatprep.subr.mxu0 0.0
    %v1560 = vand.u32 %v1025, 4294901760
    %v1561 = vsub.f32 %v1025, %v1560
    %v1562 = vand.u32 %v1561, 4294901760
    %1563 = vmatpush1.msra.mxu0 %v1562
    %1564 = vmatprep.subr.mxu0 0.0
    %v1565 = vand.u32 %v1024, 4294901760
    %v1566 = vsub.f32 %v1024, %v1565
    %v1567 = vand.u32 %v1566, 4294901760
    %1568 = vmatpush1.msra.mxu0 %v1567
    %1569 = vmatprep.subr.mxu0 0.0
    %v1570 = vand.u32 %v1023, 4294901760
    %v1571 = vsub.f32 %v1023, %v1570
    %v1572 = vand.u32 %v1571, 4294901760
    %1573 = vmatpush1.msra.mxu0 %v1572
    %1574 = vmatprep.subr.mxu0 0.0
    %v1575 = vand.u32 %v1022, 4294901760
    %v1576 = vsub.f32 %v1022, %v1575
    %v1577 = vand.u32 %v1576, 4294901760
    %1578 = vmatpush1.msra.mxu0 %v1577
    %1579 = vmatprep.subr.mxu0 0.0
    %v1580 = vand.u32 %v1021, 4294901760
    %v1581 = vsub.f32 %v1021, %v1580
    %v1582 = vand.u32 %v1581, 4294901760
    %1583 = vmatpush1.msra.mxu0 %v1582
    %1584 = vmatprep.subr.mxu0 0.0
    %v1585 = vand.u32 %v1020, 4294901760
    %v1586 = vsub.f32 %v1020, %v1585
    %v1587 = vand.u32 %v1586, 4294901760
    %1588 = vmatpush1.msra.mxu0 %v1587
    %1589 = vmatprep.subr.mxu0 0.0
    %1590 = vmatpush2.msra.mxu0 0.0
    %1591 = vmatprep.subr.mxu0 0.0
    %1592 = vmatpush2.msra.mxu0 0.0
    %1593 = vmatprep.subr.mxu0 0.0
    %1594 = vmatpush2.msra.mxu0 0.0
    %1595 = vmatprep.subr.mxu0 0.0
    %1596 = vmatpush2.msra.mxu0 0.0
    %1597 = vmatprep.subr.mxu0 0.0
    %1598 = vmatpush2.msra.mxu0 0.0
    %1599 = vmatprep.subr.mxu0 0.0
    %1600 = vmatpush2.msra.mxu0 0.0
    %1601 = vmatprep.subr.mxu0 0.0
    %1602 = vmatpush2.msra.mxu0 0.0
    %1603 = vmatprep.subr.mxu0 0.0
    %1604 = vmatpush2.msra.mxu0 0.0
    %1605 = vmatprep.subr.mxu0 0.0
    %1606 = vmatpush2.msra.mxu0 0.0
    %1607 = vmatprep.subr.mxu0 0.0
    %1608 = vmatpush2.msra.mxu0 0.0
    %1609 = vmatprep.subr.mxu0 0.0
    %1610 = vmatpush2.msra.mxu0 0.0
    %1611 = vmatprep.subr.mxu0 0.0
    %1612 = vmatpush2.msra.mxu0 0.0
    %1613 = vmatprep.subr.mxu0 0.0
    %1614 = vmatpush2.msra.mxu0 0.0
    %1615 = vmatprep.subr.mxu0 0.0
    %1616 = vmatpush2.msra.mxu0 0.0
    %1617 = vmatprep.subr.mxu0 0.0
    %1618 = vmatpush2.msra.mxu0 0.0
    %1619 = vmatprep.subr.mxu0 0.0
    %1620 = vmatpush2.msra.mxu0 0.0
    %1621 = vmatprep.mubr.f32.mxu0 0.0
    %v1622 = vand.u32 %v1018, 4294901760
    %1623 = vmatmul.mubr.f32.gmra.mxu0 %v1622
    %v1624 = vpop.f32.mrf.mxu0
    %v1625 = vadd.f32 %v1498, %v1624
    %v1626 = vpop.f32.mrf.mxu0
    %1627 = vmatprep.mubr.f32.mxu0 0.0
    %v1628 = vand.u32 %v1019, 4294901760
    %1629 = vmatmul.mubr.f32.gmra.mxu0 %v1628
    %v1630 = vpop.f32.mrf.mxu0
    %v1631 = vadd.f32 %v1506, %v1630
    %v1632 = vpop.f32.mrf.mxu0
    %1633 = vdwg.mxu0
    %1634 = vmatprep.subr.mxu0 0.0
    %v1635 = vand.u32 %v1035, 4294901760
    %1636 = vmatpush1.msra.mxu0 %v1635
    %1637 = vmatprep.subr.mxu0 0.0
    %v1638 = vand.u32 %v1034, 4294901760
    %1639 = vmatpush1.msra.mxu0 %v1638
    %1640 = vmatprep.subr.mxu0 0.0
    %v1641 = vand.u32 %v1033, 4294901760
    %1642 = vmatpush1.msra.mxu0 %v1641
    %1643 = vmatprep.subr.mxu0 0.0
    %v1644 = vand.u32 %v1032, 4294901760
    %1645 = vmatpush1.msra.mxu0 %v1644
    %1646 = vmatprep.subr.mxu0 0.0
    %v1647 = vand.u32 %v1031, 4294901760
    %1648 = vmatpush1.msra.mxu0 %v1647
    %1649 = vmatprep.subr.mxu0 0.0
    %v1650 = vand.u32 %v1030, 4294901760
    %1651 = vmatpush1.msra.mxu0 %v1650
    %1652 = vmatprep.subr.mxu0 0.0
    %v1653 = vand.u32 %v1029, 4294901760
    %1654 = vmatpush1.msra.mxu0 %v1653
    %1655 = vmatprep.subr.mxu0 0.0
    %v1656 = vand.u32 %v1028, 4294901760
    %1657 = vmatpush1.msra.mxu0 %v1656
    %1658 = vmatprep.subr.mxu0 0.0
    %v1659 = vand.u32 %v1027, 4294901760
    %1660 = vmatpush1.msra.mxu0 %v1659
    %1661 = vmatprep.subr.mxu0 0.0
    %v1662 = vand.u32 %v1026, 4294901760
    %1663 = vmatpush1.msra.mxu0 %v1662
    %1664 = vmatprep.subr.mxu0 0.0
    %v1665 = vand.u32 %v1025, 4294901760
    %1666 = vmatpush1.msra.mxu0 %v1665
    %1667 = vmatprep.subr.mxu0 0.0
    %v1668 = vand.u32 %v1024, 4294901760
    %1669 = vmatpush1.msra.mxu0 %v1668
    %1670 = vmatprep.subr.mxu0 0.0
    %v1671 = vand.u32 %v1023, 4294901760
    %1672 = vmatpush1.msra.mxu0 %v1671
    %1673 = vmatprep.subr.mxu0 0.0
    %v1674 = vand.u32 %v1022, 4294901760
    %1675 = vmatpush1.msra.mxu0 %v1674
    %1676 = vmatprep.subr.mxu0 0.0
    %v1677 = vand.u32 %v1021, 4294901760
    %1678 = vmatpush1.msra.mxu0 %v1677
    %1679 = vmatprep.subr.mxu0 0.0
    %v1680 = vand.u32 %v1020, 4294901760
    %1681 = vmatpush1.msra.mxu0 %v1680
    %1682 = vmatprep.subr.mxu0 0.0
    %1683 = vmatpush2.msra.mxu0 0.0
    %1684 = vmatprep.subr.mxu0 0.0
    %1685 = vmatpush2.msra.mxu0 0.0
    %1686 = vmatprep.subr.mxu0 0.0
    %1687 = vmatpush2.msra.mxu0 0.0
    %1688 = vmatprep.subr.mxu0 0.0
    %1689 = vmatpush2.msra.mxu0 0.0
    %1690 = vmatprep.subr.mxu0 0.0
    %1691 = vmatpush2.msra.mxu0 0.0
    %1692 = vmatprep.subr.mxu0 0.0
    %1693 = vmatpush2.msra.mxu0 0.0
    %1694 = vmatprep.subr.mxu0 0.0
    %1695 = vmatpush2.msra.mxu0 0.0
    %1696 = vmatprep.subr.mxu0 0.0
    %1697 = vmatpush2.msra.mxu0 0.0
    %1698 = vmatprep.subr.mxu0 0.0
    %1699 = vmatpush2.msra.mxu0 0.0
    %1700 = vmatprep.subr.mxu0 0.0
    %1701 = vmatpush2.msra.mxu0 0.0
    %1702 = vmatprep.subr.mxu0 0.0
    %1703 = vmatpush2.msra.mxu0 0.0
    %1704 = vmatprep.subr.mxu0 0.0
    %1705 = vmatpush2.msra.mxu0 0.0
    %1706 = vmatprep.subr.mxu0 0.0
    %1707 = vmatpush2.msra.mxu0 0.0
    %1708 = vmatprep.subr.mxu0 0.0
    %1709 = vmatpush2.msra.mxu0 0.0
    %1710 = vmatprep.subr.mxu0 0.0
    %1711 = vmatpush2.msra.mxu0 0.0
    %1712 = vmatprep.subr.mxu0 0.0
    %1713 = vmatpush2.msra.mxu0 0.0
    %1714 = vmatprep.mubr.f32.mxu0 0.0
    %v1715 = vand.u32 %v1018, 4294901760
    %1716 = vmatmul.mubr.f32.gmra.mxu0 %v1715
    %v1717 = vpop.f32.mrf.mxu0
    %v1718 = vadd.f32 %v1625, %v1717
    %v1719 = vpop.f32.mrf.mxu0
    %1720 = vmatprep.mubr.f32.mxu0 0.0
    %v1721 = vand.u32 %v1019, 4294901760
    %1722 = vmatmul.mubr.f32.gmra.mxu0 %v1721
    %v1723 = vpop.f32.mrf.mxu0
    %v1724 = vadd.f32 %v1631, %v1723
    %v1725 = vpop.f32.mrf.mxu0
    %1726 = vdwg.mxu0
    %v1727 = vmax.f32 %v1718, 0.0
    %v1728 = vmax.f32 %v1724, 0.0
    %v1729 = vld [vmem:[#allocation7] sm:$0xff]
    %v1730 = vld [vmem:[#allocation7 + $0x8] sm:$0xff]
    %v1731 = vld [vmem:[#allocation7 + $0x10] sm:$0xff]
    %v1732 = vld [vmem:[#allocation7 + $0x18] sm:$0xff]
    %v1733 = vld [vmem:[#allocation7 + $0x20] sm:$0xff]
    %v1734 = vld [vmem:[#allocation7 + $0x28] sm:$0xff]
    %v1735 = vld [vmem:[#allocation7 + $0x30] sm:$0xff]
    %v1736 = vld [vmem:[#allocation7 + $0x38] sm:$0xff]
    %v1737 = vld [vmem:[#allocation7 + $0x40] sm:$0xff]
    %v1738 = vld [vmem:[#allocation7 + $0x48] sm:$0xff]
    %v1739 = vld [vmem:[#allocation7 + $0x50] sm:$0xff]
    %v1740 = vld [vmem:[#allocation7 + $0x58] sm:$0xff]
    %v1741 = vld [vmem:[#allocation7 + $0x60] sm:$0xff]
    %v1742 = vld [vmem:[#allocation7 + $0x68] sm:$0xff]
    %v1743 = vld [vmem:[#allocation7 + $0x70] sm:$0xff]
    %v1744 = vld [vmem:[#allocation7 + $0x78] sm:$0xff]
    %v1745 = vld [vmem:[%s6] sm:$0x1]
    %v1747 = vlaneseq
    %v1748 = vshrl.u32 %v1747, 7
    %v1749 = vsub.s32 0, %v1748
    %v1750 = vrot.slane %v1745, %v1749
    %1752 = vmatprep.subr.mxu0 0.0
    %v1753 = vand.u32 %v1744, 4294901760
    %1754 = vmatpush1.msra.mxu0 %v1753
    %1755 = vmatprep.subr.mxu0 0.0
    %v1756 = vand.u32 %v1743, 4294901760
    %1757 = vmatpush1.msra.mxu0 %v1756
    %1758 = vmatprep.subr.mxu0 0.0
    %v1759 = vand.u32 %v1742, 4294901760
    %1760 = vmatpush1.msra.mxu0 %v1759
    %1761 = vmatprep.subr.mxu0 0.0
    %v1762 = vand.u32 %v1741, 4294901760
    %1763 = vmatpush1.msra.mxu0 %v1762
    %1764 = vmatprep.subr.mxu0 0.0
    %v1765 = vand.u32 %v1740, 4294901760
    %1766 = vmatpush1.msra.mxu0 %v1765
    %1767 = vmatprep.subr.mxu0 0.0
    %v1768 = vand.u32 %v1739, 4294901760
    %1769 = vmatpush1.msra.mxu0 %v1768
    %1770 = vmatprep.subr.mxu0 0.0
    %v1771 = vand.u32 %v1738, 4294901760
    %1772 = vmatpush1.msra.mxu0 %v1771
    %1773 = vmatprep.subr.mxu0 0.0
    %v1774 = vand.u32 %v1737, 4294901760
    %1775 = vmatpush1.msra.mxu0 %v1774
    %1776 = vmatprep.subr.mxu0 0.0
    %v1777 = vand.u32 %v1736, 4294901760
    %1778 = vmatpush1.msra.mxu0 %v1777
    %1779 = vmatprep.subr.mxu0 0.0
    %v1780 = vand.u32 %v1735, 4294901760
    %1781 = vmatpush1.msra.mxu0 %v1780
    %1782 = vmatprep.subr.mxu0 0.0
    %v1783 = vand.u32 %v1734, 4294901760
    %1784 = vmatpush1.msra.mxu0 %v1783
    %1785 = vmatprep.subr.mxu0 0.0
    %v1786 = vand.u32 %v1733, 4294901760
    %1787 = vmatpush1.msra.mxu0 %v1786
    %1788 = vmatprep.subr.mxu0 0.0
    %v1789 = vand.u32 %v1732, 4294901760
    %1790 = vmatpush1.msra.mxu0 %v1789
    %1791 = vmatprep.subr.mxu0 0.0
    %v1792 = vand.u32 %v1731, 4294901760
    %1793 = vmatpush1.msra.mxu0 %v1792
    %1794 = vmatprep.subr.mxu0 0.0
    %v1795 = vand.u32 %v1730, 4294901760
    %1796 = vmatpush1.msra.mxu0 %v1795
    %1797 = vmatprep.subr.mxu0 0.0
    %v1798 = vand.u32 %v1729, 4294901760
    %1799 = vmatpush1.msra.mxu0 %v1798
    %1800 = vmatprep.subr.mxu0 0.0
    %1801 = vmatpush2.msra.mxu0 0.0
    %1802 = vmatprep.subr.mxu0 0.0
    %1803 = vmatpush2.msra.mxu0 0.0
    %1804 = vmatprep.subr.mxu0 0.0
    %1805 = vmatpush2.msra.mxu0 0.0
    %1806 = vmatprep.subr.mxu0 0.0
    %1807 = vmatpush2.msra.mxu0 0.0
    %1808 = vmatprep.subr.mxu0 0.0
    %1809 = vmatpush2.msra.mxu0 0.0
    %1810 = vmatprep.subr.mxu0 0.0
    %1811 = vmatpush2.msra.mxu0 0.0
    %1812 = vmatprep.subr.mxu0 0.0
    %1813 = vmatpush2.msra.mxu0 0.0
    %1814 = vmatprep.subr.mxu0 0.0
    %1815 = vmatpush2.msra.mxu0 0.0
    %1816 = vmatprep.subr.mxu0 0.0
    %1817 = vmatpush2.msra.mxu0 0.0
    %1818 = vmatprep.subr.mxu0 0.0
    %1819 = vmatpush2.msra.mxu0 0.0
    %1820 = vmatprep.subr.mxu0 0.0
    %1821 = vmatpush2.msra.mxu0 0.0
    %1822 = vmatprep.subr.mxu0 0.0
    %1823 = vmatpush2.msra.mxu0 0.0
    %1824 = vmatprep.subr.mxu0 0.0
    %1825 = vmatpush2.msra.mxu0 0.0
    %1826 = vmatprep.subr.mxu0 0.0
    %1827 = vmatpush2.msra.mxu0 0.0
    %1828 = vmatprep.subr.mxu0 0.0
    %1829 = vmatpush2.msra.mxu0 0.0
    %1830 = vmatprep.subr.mxu0 0.0
    %1831 = vmatpush2.msra.mxu0 0.0
    %1832 = vmatprep.mubr.f32.mxu0 0.0
    %v1833 = vand.u32 %v1727, 4294901760
    %v1834 = vsub.f32 %v1727, %v1833
    %v1835 = vand.u32 %v1834, 4294901760
    %v1836 = vsub.f32 %v1834, %v1835
    %v1837 = vand.u32 %v1836, 4294901760
    %1838 = vmatmul.mubr.f32.gmra.mxu0 %v1837
    %v1839 = vpop.f32.mrf.mxu0
    %v1840 = vadd.f32 %v1750, %v1839
    %v1841 = vpop.f32.mrf.mxu0
    %1842 = vmatprep.mubr.f32.mxu0 0.0
    %v1843 = vand.u32 %v1728, 4294901760
    %v1844 = vsub.f32 %v1728, %v1843
    %v1845 = vand.u32 %v1844, 4294901760
    %v1846 = vsub.f32 %v1844, %v1845
    %v1847 = vand.u32 %v1846, 4294901760
    %1848 = vmatmul.mubr.f32.gmra.mxu0 %v1847
    %v1849 = vpop.f32.mrf.mxu0
    %v1850 = vadd.f32 %v1750, %v1849
    %v1851 = vpop.f32.mrf.mxu0
    %1852 = vdwg.mxu0
    %1853 = vmatprep.subr.mxu0 0.0
    %v1854 = vand.u32 %v1744, 4294901760
    %v1855 = vsub.f32 %v1744, %v1854
    %v1856 = vand.u32 %v1855, 4294901760
    %v1857 = vsub.f32 %v1855, %v1856
    %v1858 = vand.u32 %v1857, 4294901760
    %1859 = vmatpush1.msra.mxu0 %v1858
    %1860 = vmatprep.subr.mxu0 0.0
    %v1861 = vand.u32 %v1743, 4294901760
    %v1862 = vsub.f32 %v1743, %v1861
    %v1863 = vand.u32 %v1862, 4294901760
    %v1864 = vsub.f32 %v1862, %v1863
    %v1865 = vand.u32 %v1864, 4294901760
    %1866 = vmatpush1.msra.mxu0 %v1865
    %1867 = vmatprep.subr.mxu0 0.0
    %v1868 = vand.u32 %v1742, 4294901760
    %v1869 = vsub.f32 %v1742, %v1868
    %v1870 = vand.u32 %v1869, 4294901760
    %v1871 = vsub.f32 %v1869, %v1870
    %v1872 = vand.u32 %v1871, 4294901760
    %1873 = vmatpush1.msra.mxu0 %v1872
    %1874 = vmatprep.subr.mxu0 0.0
    %v1875 = vand.u32 %v1741, 4294901760
    %v1876 = vsub.f32 %v1741, %v1875
    %v1877 = vand.u32 %v1876, 4294901760
    %v1878 = vsub.f32 %v1876, %v1877
    %v1879 = vand.u32 %v1878, 4294901760
    %1880 = vmatpush1.msra.mxu0 %v1879
    %1881 = vmatprep.subr.mxu0 0.0
    %v1882 = vand.u32 %v1740, 4294901760
    %v1883 = vsub.f32 %v1740, %v1882
    %v1884 = vand.u32 %v1883, 4294901760
    %v1885 = vsub.f32 %v1883, %v1884
    %v1886 = vand.u32 %v1885, 4294901760
    %1887 = vmatpush1.msra.mxu0 %v1886
    %1888 = vmatprep.subr.mxu0 0.0
    %v1889 = vand.u32 %v1739, 4294901760
    %v1890 = vsub.f32 %v1739, %v1889
    %v1891 = vand.u32 %v1890, 4294901760
    %v1892 = vsub.f32 %v1890, %v1891
    %v1893 = vand.u32 %v1892, 4294901760
    %1894 = vmatpush1.msra.mxu0 %v1893
    %1895 = vmatprep.subr.mxu0 0.0
    %v1896 = vand.u32 %v1738, 4294901760
    %v1897 = vsub.f32 %v1738, %v1896
    %v1898 = vand.u32 %v1897, 4294901760
    %v1899 = vsub.f32 %v1897, %v1898
    %v1900 = vand.u32 %v1899, 4294901760
    %1901 = vmatpush1.msra.mxu0 %v1900
    %1902 = vmatprep.subr.mxu0 0.0
    %v1903 = vand.u32 %v1737, 4294901760
    %v1904 = vsub.f32 %v1737, %v1903
    %v1905 = vand.u32 %v1904, 4294901760
    %v1906 = vsub.f32 %v1904, %v1905
    %v1907 = vand.u32 %v1906, 4294901760
    %1908 = vmatpush1.msra.mxu0 %v1907
    %1909 = vmatprep.subr.mxu0 0.0
    %v1910 = vand.u32 %v1736, 4294901760
    %v1911 = vsub.f32 %v1736, %v1910
    %v1912 = vand.u32 %v1911, 4294901760
    %v1913 = vsub.f32 %v1911, %v1912
    %v1914 = vand.u32 %v1913, 4294901760
    %1915 = vmatpush1.msra.mxu0 %v1914
    %1916 = vmatprep.subr.mxu0 0.0
    %v1917 = vand.u32 %v1735, 4294901760
    %v1918 = vsub.f32 %v1735, %v1917
    %v1919 = vand.u32 %v1918, 4294901760
    %v1920 = vsub.f32 %v1918, %v1919
    %v1921 = vand.u32 %v1920, 4294901760
    %1922 = vmatpush1.msra.mxu0 %v1921
    %1923 = vmatprep.subr.mxu0 0.0
    %v1924 = vand.u32 %v1734, 4294901760
    %v1925 = vsub.f32 %v1734, %v1924
    %v1926 = vand.u32 %v1925, 4294901760
    %v1927 = vsub.f32 %v1925, %v1926
    %v1928 = vand.u32 %v1927, 4294901760
    %1929 = vmatpush1.msra.mxu0 %v1928
    %1930 = vmatprep.subr.mxu0 0.0
    %v1931 = vand.u32 %v1733, 4294901760
    %v1932 = vsub.f32 %v1733, %v1931
    %v1933 = vand.u32 %v1932, 4294901760
    %v1934 = vsub.f32 %v1932, %v1933
    %v1935 = vand.u32 %v1934, 4294901760
    %1936 = vmatpush1.msra.mxu0 %v1935
    %1937 = vmatprep.subr.mxu0 0.0
    %v1938 = vand.u32 %v1732, 4294901760
    %v1939 = vsub.f32 %v1732, %v1938
    %v1940 = vand.u32 %v1939, 4294901760
    %v1941 = vsub.f32 %v1939, %v1940
    %v1942 = vand.u32 %v1941, 4294901760
    %1943 = vmatpush1.msra.mxu0 %v1942
    %1944 = vmatprep.subr.mxu0 0.0
    %v1945 = vand.u32 %v1731, 4294901760
    %v1946 = vsub.f32 %v1731, %v1945
    %v1947 = vand.u32 %v1946, 4294901760
    %v1948 = vsub.f32 %v1946, %v1947
    %v1949 = vand.u32 %v1948, 4294901760
    %1950 = vmatpush1.msra.mxu0 %v1949
    %1951 = vmatprep.subr.mxu0 0.0
    %v1952 = vand.u32 %v1730, 4294901760
    %v1953 = vsub.f32 %v1730, %v1952
    %v1954 = vand.u32 %v1953, 4294901760
    %v1955 = vsub.f32 %v1953, %v1954
    %v1956 = vand.u32 %v1955, 4294901760
    %1957 = vmatpush1.msra.mxu0 %v1956
    %1958 = vmatprep.subr.mxu0 0.0
    %v1959 = vand.u32 %v1729, 4294901760
    %v1960 = vsub.f32 %v1729, %v1959
    %v1961 = vand.u32 %v1960, 4294901760
    %v1962 = vsub.f32 %v1960, %v1961
    %v1963 = vand.u32 %v1962, 4294901760
    %1964 = vmatpush1.msra.mxu0 %v1963
    %1965 = vmatprep.subr.mxu0 0.0
    %1966 = vmatpush2.msra.mxu0 0.0
    %1967 = vmatprep.subr.mxu0 0.0
    %1968 = vmatpush2.msra.mxu0 0.0
    %1969 = vmatprep.subr.mxu0 0.0
    %1970 = vmatpush2.msra.mxu0 0.0
    %1971 = vmatprep.subr.mxu0 0.0
    %1972 = vmatpush2.msra.mxu0 0.0
    %1973 = vmatprep.subr.mxu0 0.0
    %1974 = vmatpush2.msra.mxu0 0.0
    %1975 = vmatprep.subr.mxu0 0.0
    %1976 = vmatpush2.msra.mxu0 0.0
    %1977 = vmatprep.subr.mxu0 0.0
    %1978 = vmatpush2.msra.mxu0 0.0
    %1979 = vmatprep.subr.mxu0 0.0
    %1980 = vmatpush2.msra.mxu0 0.0
    %1981 = vmatprep.subr.mxu0 0.0
    %1982 = vmatpush2.msra.mxu0 0.0
    %1983 = vmatprep.subr.mxu0 0.0
    %1984 = vmatpush2.msra.mxu0 0.0
    %1985 = vmatprep.subr.mxu0 0.0
    %1986 = vmatpush2.msra.mxu0 0.0
    %1987 = vmatprep.subr.mxu0 0.0
    %1988 = vmatpush2.msra.mxu0 0.0
    %1989 = vmatprep.subr.mxu0 0.0
    %1990 = vmatpush2.msra.mxu0 0.0
    %1991 = vmatprep.subr.mxu0 0.0
    %1992 = vmatpush2.msra.mxu0 0.0
    %1993 = vmatprep.subr.mxu0 0.0
    %1994 = vmatpush2.msra.mxu0 0.0
    %1995 = vmatprep.subr.mxu0 0.0
    %1996 = vmatpush2.msra.mxu0 0.0
    %1997 = vmatprep.mubr.f32.mxu0 0.0
    %v1998 = vand.u32 %v1727, 4294901760
    %1999 = vmatmul.mubr.f32.gmra.mxu0 %v1998
    %v2000 = vpop.f32.mrf.mxu0
    %v2001 = vadd.f32 %v1840, %v2000
    %v2002 = vpop.f32.mrf.mxu0
    %2003 = vmatprep.mubr.f32.mxu0 0.0
    %v2004 = vand.u32 %v1728, 4294901760
    %2005 = vmatmul.mubr.f32.gmra.mxu0 %v2004
    %v2006 = vpop.f32.mrf.mxu0
    %v2007 = vadd.f32 %v1850, %v2006
    %v2008 = vpop.f32.mrf.mxu0
    %2009 = vdwg.mxu0
    %2010 = vmatprep.subr.mxu0 0.0
    %v2011 = vand.u32 %v1744, 4294901760
    %v2012 = vsub.f32 %v1744, %v2011
    %2013 = vmatpush1.msra.mxu0 %v2012
    %2014 = vmatprep.subr.mxu0 0.0
    %v2015 = vand.u32 %v1743, 4294901760
    %v2016 = vsub.f32 %v1743, %v2015
    %2017 = vmatpush1.msra.mxu0 %v2016
    %2018 = vmatprep.subr.mxu0 0.0
    %v2019 = vand.u32 %v1742, 4294901760
    %v2020 = vsub.f32 %v1742, %v2019
    %2021 = vmatpush1.msra.mxu0 %v2020
    %2022 = vmatprep.subr.mxu0 0.0
    %v2023 = vand.u32 %v1741, 4294901760
    %v2024 = vsub.f32 %v1741, %v2023
    %2025 = vmatpush1.msra.mxu0 %v2024
    %2026 = vmatprep.subr.mxu0 0.0
    %v2027 = vand.u32 %v1740, 4294901760
    %v2028 = vsub.f32 %v1740, %v2027
    %2029 = vmatpush1.msra.mxu0 %v2028
    %2030 = vmatprep.subr.mxu0 0.0
    %v2031 = vand.u32 %v1739, 4294901760
    %v2032 = vsub.f32 %v1739, %v2031
    %2033 = vmatpush1.msra.mxu0 %v2032
    %2034 = vmatprep.subr.mxu0 0.0
    %v2035 = vand.u32 %v1738, 4294901760
    %v2036 = vsub.f32 %v1738, %v2035
    %2037 = vmatpush1.msra.mxu0 %v2036
    %2038 = vmatprep.subr.mxu0 0.0
    %v2039 = vand.u32 %v1737, 4294901760
    %v2040 = vsub.f32 %v1737, %v2039
    %2041 = vmatpush1.msra.mxu0 %v2040
    %2042 = vmatprep.subr.mxu0 0.0
    %v2043 = vand.u32 %v1736, 4294901760
    %v2044 = vsub.f32 %v1736, %v2043
    %2045 = vmatpush1.msra.mxu0 %v2044
    %2046 = vmatprep.subr.mxu0 0.0
    %v2047 = vand.u32 %v1735, 4294901760
    %v2048 = vsub.f32 %v1735, %v2047
    %2049 = vmatpush1.msra.mxu0 %v2048
    %2050 = vmatprep.subr.mxu0 0.0
    %v2051 = vand.u32 %v1734, 4294901760
    %v2052 = vsub.f32 %v1734, %v2051
    %2053 = vmatpush1.msra.mxu0 %v2052
    %2054 = vmatprep.subr.mxu0 0.0
    %v2055 = vand.u32 %v1733, 4294901760
    %v2056 = vsub.f32 %v1733, %v2055
    %2057 = vmatpush1.msra.mxu0 %v2056
    %2058 = vmatprep.subr.mxu0 0.0
    %v2059 = vand.u32 %v1732, 4294901760
    %v2060 = vsub.f32 %v1732, %v2059
    %2061 = vmatpush1.msra.mxu0 %v2060
    %2062 = vmatprep.subr.mxu0 0.0
    %v2063 = vand.u32 %v1731, 4294901760
    %v2064 = vsub.f32 %v1731, %v2063
    %2065 = vmatpush1.msra.mxu0 %v2064
    %2066 = vmatprep.subr.mxu0 0.0
    %v2067 = vand.u32 %v1730, 4294901760
    %v2068 = vsub.f32 %v1730, %v2067
    %2069 = vmatpush1.msra.mxu0 %v2068
    %2070 = vmatprep.subr.mxu0 0.0
    %v2071 = vand.u32 %v1729, 4294901760
    %v2072 = vsub.f32 %v1729, %v2071
    %2073 = vmatpush1.msra.mxu0 %v2072
    %2074 = vmatprep.subr.mxu0 0.0
    %2075 = vmatpush2.msra.mxu0 0.0
    %2076 = vmatprep.subr.mxu0 0.0
    %2077 = vmatpush2.msra.mxu0 0.0
    %2078 = vmatprep.subr.mxu0 0.0
    %2079 = vmatpush2.msra.mxu0 0.0
    %2080 = vmatprep.subr.mxu0 0.0
    %2081 = vmatpush2.msra.mxu0 0.0
    %2082 = vmatprep.subr.mxu0 0.0
    %2083 = vmatpush2.msra.mxu0 0.0
    %2084 = vmatprep.subr.mxu0 0.0
    %2085 = vmatpush2.msra.mxu0 0.0
    %2086 = vmatprep.subr.mxu0 0.0
    %2087 = vmatpush2.msra.mxu0 0.0
    %2088 = vmatprep.subr.mxu0 0.0
    %2089 = vmatpush2.msra.mxu0 0.0
    %2090 = vmatprep.subr.mxu0 0.0
    %2091 = vmatpush2.msra.mxu0 0.0
    %2092 = vmatprep.subr.mxu0 0.0
    %2093 = vmatpush2.msra.mxu0 0.0
    %2094 = vmatprep.subr.mxu0 0.0
    %2095 = vmatpush2.msra.mxu0 0.0
    %2096 = vmatprep.subr.mxu0 0.0
    %2097 = vmatpush2.msra.mxu0 0.0
    %2098 = vmatprep.subr.mxu0 0.0
    %2099 = vmatpush2.msra.mxu0 0.0
    %2100 = vmatprep.subr.mxu0 0.0
    %2101 = vmatpush2.msra.mxu0 0.0
    %2102 = vmatprep.subr.mxu0 0.0
    %2103 = vmatpush2.msra.mxu0 0.0
    %2104 = vmatprep.subr.mxu0 0.0
    %2105 = vmatpush2.msra.mxu0 0.0
    %2106 = vmatprep.mubr.f32.mxu0 0.0
    %v2107 = vand.u32 %v1727, 4294901760
    %v2108 = vsub.f32 %v1727, %v2107
    %2109 = vmatmul.mubr.f32.gmra.mxu0 %v2108
    %v2110 = vpop.f32.mrf.mxu0
    %v2111 = vadd.f32 %v2001, %v2110
    %v2112 = vpop.f32.mrf.mxu0
    %2113 = vmatprep.mubr.f32.mxu0 0.0
    %v2114 = vand.u32 %v1728, 4294901760
    %v2115 = vsub.f32 %v1728, %v2114
    %2116 = vmatmul.mubr.f32.gmra.mxu0 %v2115
    %v2117 = vpop.f32.mrf.mxu0
    %v2118 = vadd.f32 %v2007, %v2117
    %v2119 = vpop.f32.mrf.mxu0
    %2120 = vdwg.mxu0
    %2121 = vmatprep.subr.mxu0 0.0
    %v2122 = vand.u32 %v1744, 4294901760
    %2123 = vmatpush1.msra.mxu0 %v2122
    %2124 = vmatprep.subr.mxu0 0.0
    %v2125 = vand.u32 %v1743, 4294901760
    %2126 = vmatpush1.msra.mxu0 %v2125
    %2127 = vmatprep.subr.mxu0 0.0
    %v2128 = vand.u32 %v1742, 4294901760
    %2129 = vmatpush1.msra.mxu0 %v2128
    %2130 = vmatprep.subr.mxu0 0.0
    %v2131 = vand.u32 %v1741, 4294901760
    %2132 = vmatpush1.msra.mxu0 %v2131
    %2133 = vmatprep.subr.mxu0 0.0
    %v2134 = vand.u32 %v1740, 4294901760
    %2135 = vmatpush1.msra.mxu0 %v2134
    %2136 = vmatprep.subr.mxu0 0.0
    %v2137 = vand.u32 %v1739, 4294901760
    %2138 = vmatpush1.msra.mxu0 %v2137
    %2139 = vmatprep.subr.mxu0 0.0
    %v2140 = vand.u32 %v1738, 4294901760
    %2141 = vmatpush1.msra.mxu0 %v2140
    %2142 = vmatprep.subr.mxu0 0.0
    %v2143 = vand.u32 %v1737, 4294901760
    %2144 = vmatpush1.msra.mxu0 %v2143
    %2145 = vmatprep.subr.mxu0 0.0
    %v2146 = vand.u32 %v1736, 4294901760
    %2147 = vmatpush1.msra.mxu0 %v2146
    %2148 = vmatprep.subr.mxu0 0.0
    %v2149 = vand.u32 %v1735, 4294901760
    %2150 = vmatpush1.msra.mxu0 %v2149
    %2151 = vmatprep.subr.mxu0 0.0
    %v2152 = vand.u32 %v1734, 4294901760
    %2153 = vmatpush1.msra.mxu0 %v2152
    %2154 = vmatprep.subr.mxu0 0.0
    %v2155 = vand.u32 %v1733, 4294901760
    %2156 = vmatpush1.msra.mxu0 %v2155
    %2157 = vmatprep.subr.mxu0 0.0
    %v2158 = vand.u32 %v1732, 4294901760
    %2159 = vmatpush1.msra.mxu0 %v2158
    %2160 = vmatprep.subr.mxu0 0.0
    %v2161 = vand.u32 %v1731, 4294901760
    %2162 = vmatpush1.msra.mxu0 %v2161
    %2163 = vmatprep.subr.mxu0 0.0
    %v2164 = vand.u32 %v1730, 4294901760
    %2165 = vmatpush1.msra.mxu0 %v2164
    %2166 = vmatprep.subr.mxu0 0.0
    %v2167 = vand.u32 %v1729, 4294901760
    %2168 = vmatpush1.msra.mxu0 %v2167
    %2169 = vmatprep.subr.mxu0 0.0
    %2170 = vmatpush2.msra.mxu0 0.0
    %2171 = vmatprep.subr.mxu0 0.0
    %2172 = vmatpush2.msra.mxu0 0.0
    %2173 = vmatprep.subr.mxu0 0.0
    %2174 = vmatpush2.msra.mxu0 0.0
    %2175 = vmatprep.subr.mxu0 0.0
    %2176 = vmatpush2.msra.mxu0 0.0
    %2177 = vmatprep.subr.mxu0 0.0
    %2178 = vmatpush2.msra.mxu0 0.0
    %2179 = vmatprep.subr.mxu0 0.0
    %2180 = vmatpush2.msra.mxu0 0.0
    %2181 = vmatprep.subr.mxu0 0.0
    %2182 = vmatpush2.msra.mxu0 0.0
    %2183 = vmatprep.subr.mxu0 0.0
    %2184 = vmatpush2.msra.mxu0 0.0
    %2185 = vmatprep.subr.mxu0 0.0
    %2186 = vmatpush2.msra.mxu0 0.0
    %2187 = vmatprep.subr.mxu0 0.0
    %2188 = vmatpush2.msra.mxu0 0.0
    %2189 = vmatprep.subr.mxu0 0.0
    %2190 = vmatpush2.msra.mxu0 0.0
    %2191 = vmatprep.subr.mxu0 0.0
    %2192 = vmatpush2.msra.mxu0 0.0
    %2193 = vmatprep.subr.mxu0 0.0
    %2194 = vmatpush2.msra.mxu0 0.0
    %2195 = vmatprep.subr.mxu0 0.0
    %2196 = vmatpush2.msra.mxu0 0.0
    %2197 = vmatprep.subr.mxu0 0.0
    %2198 = vmatpush2.msra.mxu0 0.0
    %2199 = vmatprep.subr.mxu0 0.0
    %2200 = vmatpush2.msra.mxu0 0.0
    %2201 = vmatprep.mubr.f32.mxu0 0.0
    %v2202 = vand.u32 %v1727, 4294901760
    %v2203 = vsub.f32 %v1727, %v2202
    %v2204 = vand.u32 %v2203, 4294901760
    %2205 = vmatmul.mubr.f32.gmra.mxu0 %v2204
    %v2206 = vpop.f32.mrf.mxu0
    %v2207 = vadd.f32 %v2111, %v2206
    %v2208 = vpop.f32.mrf.mxu0
    %2209 = vmatprep.mubr.f32.mxu0 0.0
    %v2210 = vand.u32 %v1728, 4294901760
    %v2211 = vsub.f32 %v1728, %v2210
    %v2212 = vand.u32 %v2211, 4294901760
    %2213 = vmatmul.mubr.f32.gmra.mxu0 %v2212
    %v2214 = vpop.f32.mrf.mxu0
    %v2215 = vadd.f32 %v2118, %v2214
    %v2216 = vpop.f32.mrf.mxu0
    %2217 = vdwg.mxu0
    %2218 = vmatprep.subr.mxu0 0.0
    %v2219 = vand.u32 %v1744, 4294901760
    %v2220 = vsub.f32 %v1744, %v2219
    %v2221 = vand.u32 %v2220, 4294901760
    %2222 = vmatpush1.msra.mxu0 %v2221
    %2223 = vmatprep.subr.mxu0 0.0
    %v2224 = vand.u32 %v1743, 4294901760
    %v2225 = vsub.f32 %v1743, %v2224
    %v2226 = vand.u32 %v2225, 4294901760
    %2227 = vmatpush1.msra.mxu0 %v2226
    %2228 = vmatprep.subr.mxu0 0.0
    %v2229 = vand.u32 %v1742, 4294901760
    %v2230 = vsub.f32 %v1742, %v2229
    %v2231 = vand.u32 %v2230, 4294901760
    %2232 = vmatpush1.msra.mxu0 %v2231
    %2233 = vmatprep.subr.mxu0 0.0
    %v2234 = vand.u32 %v1741, 4294901760
    %v2235 = vsub.f32 %v1741, %v2234
    %v2236 = vand.u32 %v2235, 4294901760
    %2237 = vmatpush1.msra.mxu0 %v2236
    %2238 = vmatprep.subr.mxu0 0.0
    %v2239 = vand.u32 %v1740, 4294901760
    %v2240 = vsub.f32 %v1740, %v2239
    %v2241 = vand.u32 %v2240, 4294901760
    %2242 = vmatpush1.msra.mxu0 %v2241
    %2243 = vmatprep.subr.mxu0 0.0
    %v2244 = vand.u32 %v1739, 4294901760
    %v2245 = vsub.f32 %v1739, %v2244
    %v2246 = vand.u32 %v2245, 4294901760
    %2247 = vmatpush1.msra.mxu0 %v2246
    %2248 = vmatprep.subr.mxu0 0.0
    %v2249 = vand.u32 %v1738, 4294901760
    %v2250 = vsub.f32 %v1738, %v2249
    %v2251 = vand.u32 %v2250, 4294901760
    %2252 = vmatpush1.msra.mxu0 %v2251
    %2253 = vmatprep.subr.mxu0 0.0
    %v2254 = vand.u32 %v1737, 4294901760
    %v2255 = vsub.f32 %v1737, %v2254
    %v2256 = vand.u32 %v2255, 4294901760
    %2257 = vmatpush1.msra.mxu0 %v2256
    %2258 = vmatprep.subr.mxu0 0.0
    %v2259 = vand.u32 %v1736, 4294901760
    %v2260 = vsub.f32 %v1736, %v2259
    %v2261 = vand.u32 %v2260, 4294901760
    %2262 = vmatpush1.msra.mxu0 %v2261
    %2263 = vmatprep.subr.mxu0 0.0
    %v2264 = vand.u32 %v1735, 4294901760
    %v2265 = vsub.f32 %v1735, %v2264
    %v2266 = vand.u32 %v2265, 4294901760
    %2267 = vmatpush1.msra.mxu0 %v2266
    %2268 = vmatprep.subr.mxu0 0.0
    %v2269 = vand.u32 %v1734, 4294901760
    %v2270 = vsub.f32 %v1734, %v2269
    %v2271 = vand.u32 %v2270, 4294901760
    %2272 = vmatpush1.msra.mxu0 %v2271
    %2273 = vmatprep.subr.mxu0 0.0
    %v2274 = vand.u32 %v1733, 4294901760
    %v2275 = vsub.f32 %v1733, %v2274
    %v2276 = vand.u32 %v2275, 4294901760
    %2277 = vmatpush1.msra.mxu0 %v2276
    %2278 = vmatprep.subr.mxu0 0.0
    %v2279 = vand.u32 %v1732, 4294901760
    %v2280 = vsub.f32 %v1732, %v2279
    %v2281 = vand.u32 %v2280, 4294901760
    %2282 = vmatpush1.msra.mxu0 %v2281
    %2283 = vmatprep.subr.mxu0 0.0
    %v2284 = vand.u32 %v1731, 4294901760
    %v2285 = vsub.f32 %v1731, %v2284
    %v2286 = vand.u32 %v2285, 4294901760
    %2287 = vmatpush1.msra.mxu0 %v2286
    %2288 = vmatprep.subr.mxu0 0.0
    %v2289 = vand.u32 %v1730, 4294901760
    %v2290 = vsub.f32 %v1730, %v2289
    %v2291 = vand.u32 %v2290, 4294901760
    %2292 = vmatpush1.msra.mxu0 %v2291
    %2293 = vmatprep.subr.mxu0 0.0
    %v2294 = vand.u32 %v1729, 4294901760
    %v2295 = vsub.f32 %v1729, %v2294
    %v2296 = vand.u32 %v2295, 4294901760
    %2297 = vmatpush1.msra.mxu0 %v2296
    %2298 = vmatprep.subr.mxu0 0.0
    %2299 = vmatpush2.msra.mxu0 0.0
    %2300 = vmatprep.subr.mxu0 0.0
    %2301 = vmatpush2.msra.mxu0 0.0
    %2302 = vmatprep.subr.mxu0 0.0
    %2303 = vmatpush2.msra.mxu0 0.0
    %2304 = vmatprep.subr.mxu0 0.0
    %2305 = vmatpush2.msra.mxu0 0.0
    %2306 = vmatprep.subr.mxu0 0.0
    %2307 = vmatpush2.msra.mxu0 0.0
    %2308 = vmatprep.subr.mxu0 0.0
    %2309 = vmatpush2.msra.mxu0 0.0
    %2310 = vmatprep.subr.mxu0 0.0
    %2311 = vmatpush2.msra.mxu0 0.0
    %2312 = vmatprep.subr.mxu0 0.0
    %2313 = vmatpush2.msra.mxu0 0.0
    %2314 = vmatprep.subr.mxu0 0.0
    %2315 = vmatpush2.msra.mxu0 0.0
    %2316 = vmatprep.subr.mxu0 0.0
    %2317 = vmatpush2.msra.mxu0 0.0
    %2318 = vmatprep.subr.mxu0 0.0
    %2319 = vmatpush2.msra.mxu0 0.0
    %2320 = vmatprep.subr.mxu0 0.0
    %2321 = vmatpush2.msra.mxu0 0.0
    %2322 = vmatprep.subr.mxu0 0.0
    %2323 = vmatpush2.msra.mxu0 0.0
    %2324 = vmatprep.subr.mxu0 0.0
    %2325 = vmatpush2.msra.mxu0 0.0
    %2326 = vmatprep.subr.mxu0 0.0
    %2327 = vmatpush2.msra.mxu0 0.0
    %2328 = vmatprep.subr.mxu0 0.0
    %2329 = vmatpush2.msra.mxu0 0.0
    %2330 = vmatprep.mubr.f32.mxu0 0.0
    %v2331 = vand.u32 %v1727, 4294901760
    %2332 = vmatmul.mubr.f32.gmra.mxu0 %v2331
    %v2333 = vpop.f32.mrf.mxu0
    %v2334 = vadd.f32 %v2207, %v2333
    %v2335 = vpop.f32.mrf.mxu0
    %2336 = vmatprep.mubr.f32.mxu0 0.0
    %v2337 = vand.u32 %v1728, 4294901760
    %2338 = vmatmul.mubr.f32.gmra.mxu0 %v2337
    %v2339 = vpop.f32.mrf.mxu0
    %v2340 = vadd.f32 %v2215, %v2339
    %v2341 = vpop.f32.mrf.mxu0
    %2342 = vdwg.mxu0
    %2343 = vmatprep.subr.mxu0 0.0
    %v2344 = vand.u32 %v1744, 4294901760
    %2345 = vmatpush1.msra.mxu0 %v2344
    %2346 = vmatprep.subr.mxu0 0.0
    %v2347 = vand.u32 %v1743, 4294901760
    %2348 = vmatpush1.msra.mxu0 %v2347
    %2349 = vmatprep.subr.mxu0 0.0
    %v2350 = vand.u32 %v1742, 4294901760
    %2351 = vmatpush1.msra.mxu0 %v2350
    %2352 = vmatprep.subr.mxu0 0.0
    %v2353 = vand.u32 %v1741, 4294901760
    %2354 = vmatpush1.msra.mxu0 %v2353
    %2355 = vmatprep.subr.mxu0 0.0
    %v2356 = vand.u32 %v1740, 4294901760
    %2357 = vmatpush1.msra.mxu0 %v2356
    %2358 = vmatprep.subr.mxu0 0.0
    %v2359 = vand.u32 %v1739, 4294901760
    %2360 = vmatpush1.msra.mxu0 %v2359
    %2361 = vmatprep.subr.mxu0 0.0
    %v2362 = vand.u32 %v1738, 4294901760
    %2363 = vmatpush1.msra.mxu0 %v2362
    %2364 = vmatprep.subr.mxu0 0.0
    %v2365 = vand.u32 %v1737, 4294901760
    %2366 = vmatpush1.msra.mxu0 %v2365
    %2367 = vmatprep.subr.mxu0 0.0
    %v2368 = vand.u32 %v1736, 4294901760
    %2369 = vmatpush1.msra.mxu0 %v2368
    %2370 = vmatprep.subr.mxu0 0.0
    %v2371 = vand.u32 %v1735, 4294901760
    %2372 = vmatpush1.msra.mxu0 %v2371
    %2373 = vmatprep.subr.mxu0 0.0
    %v2374 = vand.u32 %v1734, 4294901760
    %2375 = vmatpush1.msra.mxu0 %v2374
    %2376 = vmatprep.subr.mxu0 0.0
    %v2377 = vand.u32 %v1733, 4294901760
    %2378 = vmatpush1.msra.mxu0 %v2377
    %2379 = vmatprep.subr.mxu0 0.0
    %v2380 = vand.u32 %v1732, 4294901760
    %2381 = vmatpush1.msra.mxu0 %v2380
    %2382 = vmatprep.subr.mxu0 0.0
    %v2383 = vand.u32 %v1731, 4294901760
    %2384 = vmatpush1.msra.mxu0 %v2383
    %2385 = vmatprep.subr.mxu0 0.0
    %v2386 = vand.u32 %v1730, 4294901760
    %2387 = vmatpush1.msra.mxu0 %v2386
    %2388 = vmatprep.subr.mxu0 0.0
    %v2389 = vand.u32 %v1729, 4294901760
    %2390 = vmatpush1.msra.mxu0 %v2389
    %2391 = vmatprep.subr.mxu0 0.0
    %2392 = vmatpush2.msra.mxu0 0.0
    %2393 = vmatprep.subr.mxu0 0.0
    %2394 = vmatpush2.msra.mxu0 0.0
    %2395 = vmatprep.subr.mxu0 0.0
    %2396 = vmatpush2.msra.mxu0 0.0
    %2397 = vmatprep.subr.mxu0 0.0
    %2398 = vmatpush2.msra.mxu0 0.0
    %2399 = vmatprep.subr.mxu0 0.0
    %2400 = vmatpush2.msra.mxu0 0.0
    %2401 = vmatprep.subr.mxu0 0.0
    %2402 = vmatpush2.msra.mxu0 0.0
    %2403 = vmatprep.subr.mxu0 0.0
    %2404 = vmatpush2.msra.mxu0 0.0
    %2405 = vmatprep.subr.mxu0 0.0
    %2406 = vmatpush2.msra.mxu0 0.0
    %2407 = vmatprep.subr.mxu0 0.0
    %2408 = vmatpush2.msra.mxu0 0.0
    %2409 = vmatprep.subr.mxu0 0.0
    %2410 = vmatpush2.msra.mxu0 0.0
    %2411 = vmatprep.subr.mxu0 0.0
    %2412 = vmatpush2.msra.mxu0 0.0
    %2413 = vmatprep.subr.mxu0 0.0
    %2414 = vmatpush2.msra.mxu0 0.0
    %2415 = vmatprep.subr.mxu0 0.0
    %2416 = vmatpush2.msra.mxu0 0.0
    %2417 = vmatprep.subr.mxu0 0.0
    %2418 = vmatpush2.msra.mxu0 0.0
    %2419 = vmatprep.subr.mxu0 0.0
    %2420 = vmatpush2.msra.mxu0 0.0
    %2421 = vmatprep.subr.mxu0 0.0
    %2422 = vmatpush2.msra.mxu0 0.0
    %2423 = vmatprep.mubr.f32.mxu0 0.0
    %v2424 = vand.u32 %v1727, 4294901760
    %2425 = vmatmul.mubr.f32.gmra.mxu0 %v2424
    %v2426 = vpop.f32.mrf.mxu0
    %v2427 = vadd.f32 %v2334, %v2426
    %v2428 = vpop.f32.mrf.mxu0
    %2429 = vmatprep.mubr.f32.mxu0 0.0
    %v2430 = vand.u32 %v1728, 4294901760
    %2431 = vmatmul.mubr.f32.gmra.mxu0 %v2430
    %v2432 = vpop.f32.mrf.mxu0
    %v2433 = vadd.f32 %v2340, %v2432
    %v2434 = vpop.f32.mrf.mxu0
    %2435 = vdwg.mxu0
    %v2436 = vmax.f32 %v2427, 0.0
    %v2437 = vmax.f32 %v2433, 0.0
    %v2438 = vadd.f32 %v2436, %v1009
    %v2439 = vadd.f32 %v2437, %v1016
    %2440 = vst [vmem:[#allocation8] sm:$0xff] %v2438
    %2441 = vst [vmem:[#allocation8 + $0x8] sm:$0xff] %v2439
    // Predicated region
    $region42: #{ff_forward.1} parent=1 // pred_check
      _
    $region43: #{ff_forward.1} parent=1 // pred_check_branch
      %2443 = sbr.rel (0) target = $region45
    $region44: #{ff_forward.1} parent=1 // pred_region
      %s2445 = ssub.s32 256, 256
      %2446 = vsyncadd [#allocation4], %s2445
      %s2447 = sshll.u32 [#allocation8], 4
      %s2448 = int_to_ptr.vmem [resolvable:$true] %s2447
      %2453 = dma.vmem_to_hbm [thread:$0]  %s2448, 256, %s7, [#allocation4], 128, 128, 8
    $region45: #{ff_forward.1} parent=1 // pred_fallthru
      _
    // Predicated region
    $region46: #{ff_forward.1} parent=1 // pred_check
      _
    $region47: #{ff_forward.1} parent=1 // pred_check_branch
      %2455 = sbr.rel (0) target = $region49
    $region48: #{ff_forward.1} parent=1 // pred_region
      %2456 = dma.done [#allocation4], 256
    $region49: #{ff_forward.1} parent=1 // pred_fallthru
      _
    %2457 = vsyncpa [#allocation3], 1
    %2458 = vsyncpa [#allocation6], 1
    %2459 = vsyncpa [#allocation4], 1

</llo_original>
